<compile_context>
chip_gen: v7x
topology: tpu7x:2x2x1
jax: 0.10.0
libtpu: 0.0.40
codegen_flags: <defaults>
</compile_context>

<pallas_src>
import jax
import jax.numpy as jnp
from jax.experimental import pallas as pl
from jax.experimental.pallas import tpu as pltpu

LANE = 128
SUBLANE = 8


def _round_up(x, m):
    return ((x + m - 1) // m) * m


def qnet_kernel(x_ref, w1_ref, b1_ref, w2_ref, b2_ref, w3_ref, b3_ref, o_ref):
    # One batch tile per grid step.  Weights/biases are VMEM-resident.
    x = x_ref[...]                                                   # (TB, S_p) bf16
    h1 = jnp.dot(x, w1_ref[...], preferred_element_type=jnp.float32) + b1_ref[...]
    h1 = jnp.maximum(h1, 0.0)                                        # f32 elementwise
    h2 = jnp.dot(h1.astype(w2_ref.dtype), w2_ref[...],
                 preferred_element_type=jnp.float32) + b2_ref[...]
    h2 = jnp.maximum(h2, 0.0)
    out = jnp.dot(h2.astype(w3_ref.dtype), w3_ref[...],
                  preferred_element_type=jnp.float32) + b3_ref[...]
    o_ref[...] = out.astype(o_ref.dtype)                             # lane-dense store


def init_qnet_params(key, state_space, action_space, hidden_space=128):
    """PyTorch nn.Linear-style init; weights stored transposed [in, out]."""
    def linear(k, fan_in, fan_out):
        kw, kb = jax.random.split(k)
        bound = 1.0 / jnp.sqrt(fan_in)
        w = jax.random.uniform(kw, (fan_in, fan_out), jnp.float32, -bound, bound)
        b = jax.random.uniform(kb, (1, fan_out), jnp.float32, -bound, bound)
        return w, b

    k1, k2, k3 = jax.random.split(key, 3)
    w1, b1 = linear(k1, state_space, hidden_space)
    w2, b2 = linear(k2, hidden_space, hidden_space)
    w3, b3 = linear(k3, hidden_space, action_space)
    return {"w1": w1, "b1": b1, "w2": w2, "b2": b2, "w3": w3, "b3": b3}


def pad_qnet_params(params, compute_dtype=jnp.bfloat16):
    """Zero-pad feature dims to multiples of 128 and cast weights to compute dtype."""
    S, H = params["w1"].shape
    A = params["w3"].shape[1]
    S_p, H_p, A_p = _round_up(S, LANE), _round_up(H, LANE), _round_up(A, LANE)

    def pad2(a, r, c, dtype):
        out = jnp.zeros((r, c), dtype)
        return out.at[: a.shape[0], : a.shape[1]].set(a.astype(dtype))

    return {
        "w1": pad2(params["w1"], S_p, H_p, compute_dtype),
        "b1": pad2(params["b1"], 1, H_p, jnp.float32),
        "w2": pad2(params["w2"], H_p, H_p, compute_dtype),
        "b2": pad2(params["b2"], 1, H_p, jnp.float32),
        "w3": pad2(params["w3"], H_p, A_p, compute_dtype),
        "b3": pad2(params["b3"], 1, A_p, jnp.float32),
        "state_space": S,
        "action_space": A,
    }


def qnet_forward(x, padded, *, batch_tile=512, compute_dtype=jnp.bfloat16):
    """x: [B, state_space] float32 -> [B, action_space] float32."""
    w1, b1 = padded["w1"], padded["b1"]
    w2, b2 = padded["w2"], padded["b2"]
    w3, b3 = padded["w3"], padded["b3"]
    S, A = padded["state_space"], padded["action_space"]
    S_p, H_p = w1.shape
    A_p = w3.shape[1]

    B = x.shape[0]
    tb = max(SUBLANE, batch_tile)
    B_p = _round_up(max(B, 1), tb)

    # Lane-pad the feature dim, tile-pad the batch dim (zeros are inert).
    x_p = jnp.zeros((B_p, S_p), compute_dtype).at[:B, :S].set(x.astype(compute_dtype))

    const = lambda i: (0, 0)
    flops = 2 * B_p * (S_p * H_p + H_p * H_p + H_p * A_p)
    bytes_accessed = int(
        x_p.size * x_p.dtype.itemsize
        + sum(a.size * a.dtype.itemsize for a in (w1, b1, w2, b2, w3, b3))
        + B_p * A_p * 4
    )

    out = pl.pallas_call(
        qnet_kernel,
        out_shape=jax.ShapeDtypeStruct((B_p, A_p), jnp.float32),
        grid=(B_p // tb,),
        in_specs=[
            pl.BlockSpec((tb, S_p), lambda i: (i, 0)),   # x: one batch tile per step
            pl.BlockSpec((S_p, H_p), const),             # weights stay VMEM-resident
            pl.BlockSpec((1, H_p), const),
            pl.BlockSpec((H_p, H_p), const),
            pl.BlockSpec((1, H_p), const),
            pl.BlockSpec((H_p, A_p), const),
            pl.BlockSpec((1, A_p), const),
        ],
        out_specs=pl.BlockSpec((tb, A_p), lambda i: (i, 0)),
        compiler_params=pltpu.CompilerParams(
            dimension_semantics=("parallel",)),
        cost_estimate=pl.CostEstimate(
            flops=flops, transcendentals=0, bytes_accessed=bytes_accessed),
    )(x_p, w1, b1, w2, b2, w3, b3)

    return out[:B, :A]


def qnet_reference_f32(x, p):
    h1 = jnp.maximum(x @ p["w1"] + p["b1"], 0.0)
    h2 = jnp.maximum(h1 @ p["w2"] + p["b2"], 0.0)
    return h2 @ p["w3"] + p["b3"]


def qnet_reference_matched(x, p, compute_dtype=jnp.bfloat16):
    """Reference that mirrors the kernel's bf16-matmul / f32-accumulate precision."""
    xc = x.astype(compute_dtype)
    h1 = jnp.maximum(
        jnp.dot(xc, p["w1"].astype(compute_dtype),
                preferred_element_type=jnp.float32) + p["b1"], 0.0)
    h2 = jnp.maximum(
        jnp.dot(h1.astype(compute_dtype), p["w2"].astype(compute_dtype),
                preferred_element_type=jnp.float32) + p["b2"], 0.0)
    return jnp.dot(h2.astype(compute_dtype), p["w3"].astype(compute_dtype),
                   preferred_element_type=jnp.float32) + p["b3"]


if __name__ == "__main__":
    key = jax.random.PRNGKey(0)
    k_param, k_x, k_x2 = jax.random.split(key, 3)

    # Small shapes consistent with the DQN module (e.g. CartPole-like).
    batch, state_space, action_space, hidden_space = 8, 4, 2, 32

    params = init_qnet_params(k_param, state_space, action_space, hidden_space)
    padded = pad_qnet_params(params)

    x = jax.random.normal(k_x, (batch, state_space), jnp.float32)
    out = jax.block_until_ready(qnet_forward(x, padded, batch_tile=512))
    assert out.shape == (batch, action_space)
    # Exact-semantics check against a precision-matched reference.
    ref_m = qnet_reference_matched(x, params)
    assert jnp.allclose(out, ref_m, atol=1e-3, rtol=1e-3)
    # Sanity check against the pure-f32 PyTorch-equivalent forward.
    ref_f32 = qnet_reference_f32(x, params)
    assert jnp.allclose(out, ref_f32, atol=1e-1, rtol=1e-1)

    # Exercise a multi-step batch grid (replay-buffer-sized batch).
    x2 = jax.random.normal(k_x2, (1024, state_space), jnp.float32)
    out2 = jax.block_until_ready(qnet_forward(x2, padded, batch_tile=512))
    assert out2.shape == (1024, action_space)
    assert jnp.allclose(out2, qnet_reference_matched(x2, params), atol=1e-3, rtol=1e-3)
    assert jnp.allclose(out2, qnet_reference_f32(x2, params), atol=1e-1, rtol=1e-1)

    print("KERNEL_OK")
</pallas_src>

<mosaic_0001>
module attributes {stable_mosaic.version = 11 : i64} {
  func.func @qnet_kernel(%arg0: i32, %arg1: memref<512x128xbf16, #tpu.memory_space<vmem>>, %arg2: memref<128x128xbf16, #tpu.memory_space<vmem>>, %arg3: memref<1x128xf32, #tpu.memory_space<vmem>>, %arg4: memref<128x128xbf16, #tpu.memory_space<vmem>>, %arg5: memref<1x128xf32, #tpu.memory_space<vmem>>, %arg6: memref<128x128xbf16, #tpu.memory_space<vmem>>, %arg7: memref<1x128xf32, #tpu.memory_space<vmem>>, %arg8: memref<512x128xf32, #tpu.memory_space<vmem>>) attributes {dimension_semantics = [#tpu.dimension_semantics<parallel>], iteration_bounds = array<i64: 1>, scalar_prefetch = 0 : i64, scratch_operands = 0 : i64, tpu.core_type = #tpu.core_type<tc>, window_params = [{transform_indices = @transform_0, window_bounds = array<i64: 512, 128>}, {pipeline_mode = #tpu.pipeline_mode<synchronous>, transform_indices = @transform_1, window_bounds = array<i64: 128, 128>}, {pipeline_mode = #tpu.pipeline_mode<synchronous>, transform_indices = @transform_2, window_bounds = array<i64: 1, 128>}, {pipeline_mode = #tpu.pipeline_mode<synchronous>, transform_indices = @transform_3, window_bounds = array<i64: 128, 128>}, {pipeline_mode = #tpu.pipeline_mode<synchronous>, transform_indices = @transform_4, window_bounds = array<i64: 1, 128>}, {pipeline_mode = #tpu.pipeline_mode<synchronous>, transform_indices = @transform_5, window_bounds = array<i64: 128, 128>}, {pipeline_mode = #tpu.pipeline_mode<synchronous>, transform_indices = @transform_6, window_bounds = array<i64: 1, 128>}, {transform_indices = @transform_7, window_bounds = array<i64: 512, 128>}]} {
    %c0 = arith.constant 0 : index
    %c0_0 = arith.constant 0 : index
    %0 = vector.load %arg1[%c0, %c0_0] : memref<512x128xbf16, #tpu.memory_space<vmem>>, vector<512x128xbf16>
    %c0_1 = arith.constant 0 : index
    %c0_2 = arith.constant 0 : index
    %1 = vector.load %arg2[%c0_1, %c0_2] : memref<128x128xbf16, #tpu.memory_space<vmem>>, vector<128x128xbf16>
    %cst = arith.constant dense<0.000000e+00> : vector<512x128xf32>
    %2 = tpu.matmul %0, %1, %cst {dimension_numbers = #tpu.dot_dimension_numbers<[1], [0], [0], [1], [0, 0, 1, 1], [], []>} : vector<512x128xbf16>, vector<128x128xbf16>, vector<512x128xf32> -> vector<512x128xf32>
    %c0_3 = arith.constant 0 : index
    %c0_4 = arith.constant 0 : index
    %3 = vector.load %arg3[%c0_3, %c0_4] : memref<1x128xf32, #tpu.memory_space<vmem>>, vector<1x128xf32>
    %4 = vector.broadcast %3 : vector<1x128xf32> to vector<512x128xf32>
    %5 = arith.addf %2, %4 : vector<512x128xf32>
    %cst_5 = arith.constant 0.000000e+00 : f32
    %6 = vector.broadcast %cst_5 : f32 to vector<512x128xf32>
    %7 = arith.maximumf %5, %6 : vector<512x128xf32>
    %8 = arith.truncf %7 : vector<512x128xf32> to vector<512x128xbf16>
    %c0_6 = arith.constant 0 : index
    %c0_7 = arith.constant 0 : index
    %9 = vector.load %arg4[%c0_6, %c0_7] : memref<128x128xbf16, #tpu.memory_space<vmem>>, vector<128x128xbf16>
    %cst_8 = arith.constant dense<0.000000e+00> : vector<512x128xf32>
    %10 = tpu.matmul %8, %9, %cst_8 {dimension_numbers = #tpu.dot_dimension_numbers<[1], [0], [0], [1], [0, 0, 1, 1], [], []>} : vector<512x128xbf16>, vector<128x128xbf16>, vector<512x128xf32> -> vector<512x128xf32>
    %c0_9 = arith.constant 0 : index
    %c0_10 = arith.constant 0 : index
    %11 = vector.load %arg5[%c0_9, %c0_10] : memref<1x128xf32, #tpu.memory_space<vmem>>, vector<1x128xf32>
    %12 = vector.broadcast %11 : vector<1x128xf32> to vector<512x128xf32>
    %13 = arith.addf %10, %12 : vector<512x128xf32>
    %cst_11 = arith.constant 0.000000e+00 : f32
    %14 = vector.broadcast %cst_11 : f32 to vector<512x128xf32>
    %15 = arith.maximumf %13, %14 : vector<512x128xf32>
    %16 = arith.truncf %15 : vector<512x128xf32> to vector<512x128xbf16>
    %c0_12 = arith.constant 0 : index
    %c0_13 = arith.constant 0 : index
    %17 = vector.load %arg6[%c0_12, %c0_13] : memref<128x128xbf16, #tpu.memory_space<vmem>>, vector<128x128xbf16>
    %cst_14 = arith.constant dense<0.000000e+00> : vector<512x128xf32>
    %18 = tpu.matmul %16, %17, %cst_14 {dimension_numbers = #tpu.dot_dimension_numbers<[1], [0], [0], [1], [0, 0, 1, 1], [], []>} : vector<512x128xbf16>, vector<128x128xbf16>, vector<512x128xf32> -> vector<512x128xf32>
    %c0_15 = arith.constant 0 : index
    %c0_16 = arith.constant 0 : index
    %19 = vector.load %arg7[%c0_15, %c0_16] : memref<1x128xf32, #tpu.memory_space<vmem>>, vector<1x128xf32>
    %20 = vector.broadcast %19 : vector<1x128xf32> to vector<512x128xf32>
    %21 = arith.addf %18, %20 : vector<512x128xf32>
    %c0_17 = arith.constant 0 : index
    %c0_18 = arith.constant 0 : index
    %22 = vector.load %arg8[%c0_17, %c0_18] : memref<512x128xf32, #tpu.memory_space<vmem>>, vector<512x128xf32>
    tpu.vector_store %arg8[%c0_17, %c0_18], %21 {strides = array<i32>} : memref<512x128xf32, #tpu.memory_space<vmem>>, vector<512x128xf32>,
    return
  }
  func.func @transform_0(%arg0: i32) -> (i32, i32) {
    %c0_i32 = arith.constant 0 : i32
    %c0_i32_0 = arith.constant 0 : i32
    return %arg0, %c0_i32 : i32, i32
  }
  func.func @transform_1(%arg0: i32) -> (i32, i32) {
    %c0_i32 = arith.constant 0 : i32
    %c0_i32_0 = arith.constant 0 : i32
    %c0_i32_1 = arith.constant 0 : i32
    return %c0_i32, %c0_i32_0 : i32, i32
  }
  func.func @transform_2(%arg0: i32) -> (i32, i32) {
    %c0_i32 = arith.constant 0 : i32
    %c0_i32_0 = arith.constant 0 : i32
    %c0_i32_1 = arith.constant 0 : i32
    return %c0_i32, %c0_i32_0 : i32, i32
  }
  func.func @transform_3(%arg0: i32) -> (i32, i32) {
    %c0_i32 = arith.constant 0 : i32
    %c0_i32_0 = arith.constant 0 : i32
    %c0_i32_1 = arith.constant 0 : i32
    return %c0_i32, %c0_i32_0 : i32, i32
  }
  func.func @transform_4(%arg0: i32) -> (i32, i32) {
    %c0_i32 = arith.constant 0 : i32
    %c0_i32_0 = arith.constant 0 : i32
    %c0_i32_1 = arith.constant 0 : i32
    return %c0_i32, %c0_i32_0 : i32, i32
  }
  func.func @transform_5(%arg0: i32) -> (i32, i32) {
    %c0_i32 = arith.constant 0 : i32
    %c0_i32_0 = arith.constant 0 : i32
    %c0_i32_1 = arith.constant 0 : i32
    return %c0_i32, %c0_i32_0 : i32, i32
  }
  func.func @transform_6(%arg0: i32) -> (i32, i32) {
    %c0_i32 = arith.constant 0 : i32
    %c0_i32_0 = arith.constant 0 : i32
    %c0_i32_1 = arith.constant 0 : i32
    return %c0_i32, %c0_i32_0 : i32, i32
  }
  func.func @transform_7(%arg0: i32) -> (i32, i32) {
    %c0_i32 = arith.constant 0 : i32
    %c0_i32_0 = arith.constant 0 : i32
    return %arg0, %c0_i32 : i32, i32
  }
}

</mosaic_0001>

<llo_original>
// kernel: tpu_custom_call.1
$region0: #{tpu_custom_call.1}
  #allocation0 [shape = 'u32[]', space=smem, size = 0x4, offset = 0x4, fixed_abs, tag = 'smem constant byte address 0x4 - core index']
  #allocation1 [shape = 'u32[144,128]{1,0:T(1,128)}', space=vmem, size = 0x12000, scoped, tag = 'internal scratch']
  %s0 = inlined_call_operand.hbm [shape: bf16[512,128], index: 0, kind: input, shape index: {}]
  %s1 = inlined_call_operand.hbm [shape: bf16[128,128], index: 1, kind: input, shape index: {}]
  %s2 = inlined_call_operand.vmem [shape: f32[1,128], index: 2, kind: input, shape index: {}]
  %s3 = inlined_call_operand.hbm [shape: bf16[128,128], index: 3, kind: input, shape index: {}]
  %s4 = inlined_call_operand.vmem [shape: f32[1,128], index: 4, kind: input, shape index: {}]
  %s5 = inlined_call_operand.hbm [shape: bf16[128,128], index: 5, kind: input, shape index: {}]
  %s6 = inlined_call_operand.vmem [shape: f32[1,128], index: 6, kind: input, shape index: {}]
  %s7 = inlined_call_operand.hbm [shape: f32[512,128], index: 7, kind: output, shape index: {}]
  %s8 = sld [smem:[#allocation0]]
  $region54: #{tpu_custom_call.1} parent=0
    _
  %s10 = ssub.s32 1, %s8
  %s11 = scalar_select 0, %s10, %s8
  $region1: #{tpu_custom_call.1} parent=0
    #allocation2 [shape = 'u8[131072]{0}', space=vmem, size = 0x20000, scoped, tag = 'input window, operand 0, single buffered']
    #allocation3 [shape = 's32[1]{0}', space=sflag, size = 0x4, scoped, tag = 'scoped memory for tpu_custom_call.1']
    #allocation4 [shape = 's32[1]{0}', space=sflag, size = 0x4, scoped, tag = 'scoped memory for tpu_custom_call.1']
    #allocation5 [shape = 'u8[32768]{0}', space=vmem, size = 0x8000, scoped, tag = 'input window, operand 1, single buffered']
    #allocation6 [shape = 's32[1]{0}', space=sflag, size = 0x4, scoped, tag = 'scoped memory for tpu_custom_call.1']
    #allocation7 [shape = 'u8[32768]{0}', space=vmem, size = 0x8000, scoped, tag = 'input window, operand 3, single buffered']
    #allocation8 [shape = 'u8[32768]{0}', space=vmem, size = 0x8000, scoped, tag = 'input window, operand 5, single buffered']
    #allocation9 [shape = 's32[1]{0}', space=sflag, size = 0x4, scoped, tag = 'scoped memory for tpu_custom_call.1']
    #allocation10 [shape = 'u8[262144]{0}', space=vmem, size = 0x40000, scoped, tag = 'output window, operand 0, single buffered']
    %12 = vsyncpa [#allocation3], 0
    %13 = vsyncpa [#allocation6], 0
    %14 = vsyncpa [#allocation9], 0
    %15 = vsyncpa [#allocation4], 0
    // Predicated region
    $region2: #{tpu_custom_call.1} parent=1 // pred_check
      _
    $region3: #{tpu_custom_call.1} parent=1 // pred_check_branch
      %17 = sbr.rel (0) target = $region5
    $region4: #{tpu_custom_call.1} parent=1 // pred_region
      %s19 = ssub.s32 4096, 4096
      %20 = vsyncadd [#allocation3], %s19
      %s21 = sshll.u32 [#allocation2], 4
      %s22 = int_to_ptr.vmem [resolvable:$true] %s21
      %27 = dma.hbm_to_vmem [thread:$0]  %s0, 4096, %s22, [#allocation3], 64, 64, 4
    $region5: #{tpu_custom_call.1} parent=1 // pred_fallthru
      _
    // Predicated region
    $region6: #{tpu_custom_call.1} parent=1 // pred_check
      _
    $region7: #{tpu_custom_call.1} parent=1 // pred_check_branch
      %29 = sbr.rel (0) target = $region9
    $region8: #{tpu_custom_call.1} parent=1 // pred_region
      %s31 = ssub.s32 1024, 1024
      %32 = vsyncadd [#allocation6], %s31
      %s33 = sshll.u32 [#allocation5], 4
      %s34 = int_to_ptr.vmem [resolvable:$true] %s33
      %39 = dma.hbm_to_vmem [thread:$0]  %s1, 1024, %s34, [#allocation6], 64, 64, 4
    $region9: #{tpu_custom_call.1} parent=1 // pred_fallthru
      _
    // Predicated region
    $region10: #{tpu_custom_call.1} parent=1 // pred_check
      _
    $region11: #{tpu_custom_call.1} parent=1 // pred_check_branch
      %41 = sbr.rel (0) target = $region13
    $region12: #{tpu_custom_call.1} parent=1 // pred_region
      _
    $region13: #{tpu_custom_call.1} parent=1 // pred_fallthru
      _
    // Predicated region
    $region14: #{tpu_custom_call.1} parent=1 // pred_check
      _
    $region15: #{tpu_custom_call.1} parent=1 // pred_check_branch
      %43 = sbr.rel (0) target = $region17
    $region16: #{tpu_custom_call.1} parent=1 // pred_region
      %s45 = ssub.s32 1024, 1024
      %46 = vsyncadd [#allocation6], %s45
      %s47 = sshll.u32 [#allocation7], 4
      %s48 = int_to_ptr.vmem [resolvable:$true] %s47
      %53 = dma.hbm_to_vmem [thread:$0]  %s3, 1024, %s48, [#allocation6], 64, 64, 4
    $region17: #{tpu_custom_call.1} parent=1 // pred_fallthru
      _
    // Predicated region
    $region18: #{tpu_custom_call.1} parent=1 // pred_check
      _
    $region19: #{tpu_custom_call.1} parent=1 // pred_check_branch
      %55 = sbr.rel (0) target = $region21
    $region20: #{tpu_custom_call.1} parent=1 // pred_region
      _
    $region21: #{tpu_custom_call.1} parent=1 // pred_fallthru
      _
    // Predicated region
    $region22: #{tpu_custom_call.1} parent=1 // pred_check
      _
    $region23: #{tpu_custom_call.1} parent=1 // pred_check_branch
      %57 = sbr.rel (0) target = $region25
    $region24: #{tpu_custom_call.1} parent=1 // pred_region
      %s59 = ssub.s32 1024, 1024
      %60 = vsyncadd [#allocation9], %s59
      %s61 = sshll.u32 [#allocation8], 4
      %s62 = int_to_ptr.vmem [resolvable:$true] %s61
      %67 = dma.hbm_to_vmem [thread:$0]  %s5, 1024, %s62, [#allocation9], 64, 64, 4
    $region25: #{tpu_custom_call.1} parent=1 // pred_fallthru
      _
    // Predicated region
    $region26: #{tpu_custom_call.1} parent=1 // pred_check
      _
    $region27: #{tpu_custom_call.1} parent=1 // pred_check_branch
      %69 = sbr.rel (0) target = $region29
    $region28: #{tpu_custom_call.1} parent=1 // pred_region
      _
    $region29: #{tpu_custom_call.1} parent=1 // pred_fallthru
      _
    // Predicated region
    $region30: #{tpu_custom_call.1} parent=1 // pred_check
      _
    $region31: #{tpu_custom_call.1} parent=1 // pred_check_branch
      %71 = sbr.rel (0) target = $region33
    $region32: #{tpu_custom_call.1} parent=1 // pred_region
      %72 = dma.done [#allocation3], 4096
    $region33: #{tpu_custom_call.1} parent=1 // pred_fallthru
      _
    // Predicated region
    $region34: #{tpu_custom_call.1} parent=1 // pred_check
      _
    $region35: #{tpu_custom_call.1} parent=1 // pred_check_branch
      %74 = sbr.rel (0) target = $region37
    $region36: #{tpu_custom_call.1} parent=1 // pred_region
      %75 = dma.done [#allocation6], 1024
    $region37: #{tpu_custom_call.1} parent=1 // pred_fallthru
      _
    // Predicated region
    $region38: #{tpu_custom_call.1} parent=1 // pred_check
      _
    $region39: #{tpu_custom_call.1} parent=1 // pred_check_branch
      %77 = sbr.rel (0) target = $region41
    $region40: #{tpu_custom_call.1} parent=1 // pred_region
      %78 = dma.done [#allocation6], 1024
    $region41: #{tpu_custom_call.1} parent=1 // pred_fallthru
      _
    // Predicated region
    $region42: #{tpu_custom_call.1} parent=1 // pred_check
      _
    $region43: #{tpu_custom_call.1} parent=1 // pred_check_branch
      %80 = sbr.rel (0) target = $region45
    $region44: #{tpu_custom_call.1} parent=1 // pred_region
      %81 = dma.done [#allocation9], 1024
    $region45: #{tpu_custom_call.1} parent=1 // pred_fallthru
      _
    %v83 = vld [vmem:[#allocation2] sm:$0xf]
    %v84 = vld [vmem:[#allocation2 + $0x4] sm:$0xf]
    %v85 = vld [vmem:[#allocation2 + $0x8] sm:$0xf]
    %v86 = vld [vmem:[#allocation2 + $0xc] sm:$0xf]
    %v87 = vld [vmem:[#allocation2 + $0x10] sm:$0xf]
    %v88 = vld [vmem:[#allocation2 + $0x14] sm:$0xf]
    %v89 = vld [vmem:[#allocation2 + $0x18] sm:$0xf]
    %v90 = vld [vmem:[#allocation2 + $0x1c] sm:$0xf]
    %v91 = vld [vmem:[#allocation2 + $0x20] sm:$0xf]
    %v92 = vld [vmem:[#allocation2 + $0x24] sm:$0xf]
    %v93 = vld [vmem:[#allocation2 + $0x28] sm:$0xf]
    %v94 = vld [vmem:[#allocation2 + $0x2c] sm:$0xf]
    %v95 = vld [vmem:[#allocation2 + $0x30] sm:$0xf]
    %v96 = vld [vmem:[#allocation2 + $0x34] sm:$0xf]
    %v97 = vld [vmem:[#allocation2 + $0x38] sm:$0xf]
    %v98 = vld [vmem:[#allocation2 + $0x3c] sm:$0xf]
    %v99 = vld [vmem:[#allocation2 + $0x40] sm:$0xf]
    %v100 = vld [vmem:[#allocation2 + $0x44] sm:$0xf]
    %v101 = vld [vmem:[#allocation2 + $0x48] sm:$0xf]
    %v102 = vld [vmem:[#allocation2 + $0x4c] sm:$0xf]
    %v103 = vld [vmem:[#allocation2 + $0x50] sm:$0xf]
    %v104 = vld [vmem:[#allocation2 + $0x54] sm:$0xf]
    %v105 = vld [vmem:[#allocation2 + $0x58] sm:$0xf]
    %v106 = vld [vmem:[#allocation2 + $0x5c] sm:$0xf]
    %v107 = vld [vmem:[#allocation2 + $0x60] sm:$0xf]
    %v108 = vld [vmem:[#allocation2 + $0x64] sm:$0xf]
    %v109 = vld [vmem:[#allocation2 + $0x68] sm:$0xf]
    %v110 = vld [vmem:[#allocation2 + $0x6c] sm:$0xf]
    %v111 = vld [vmem:[#allocation2 + $0x70] sm:$0xf]
    %v112 = vld [vmem:[#allocation2 + $0x74] sm:$0xf]
    %v113 = vld [vmem:[#allocation2 + $0x78] sm:$0xf]
    %v114 = vld [vmem:[#allocation2 + $0x7c] sm:$0xf]
    %v115 = vld [vmem:[#allocation2 + $0x80] sm:$0xf]
    %v116 = vld [vmem:[#allocation2 + $0x84] sm:$0xf]
    %v117 = vld [vmem:[#allocation2 + $0x88] sm:$0xf]
    %v118 = vld [vmem:[#allocation2 + $0x8c] sm:$0xf]
    %v119 = vld [vmem:[#allocation2 + $0x90] sm:$0xf]
    %v120 = vld [vmem:[#allocation2 + $0x94] sm:$0xf]
    %v121 = vld [vmem:[#allocation2 + $0x98] sm:$0xf]
    %v122 = vld [vmem:[#allocation2 + $0x9c] sm:$0xf]
    %v123 = vld [vmem:[#allocation2 + $0xa0] sm:$0xf]
    %v124 = vld [vmem:[#allocation2 + $0xa4] sm:$0xf]
    %v125 = vld [vmem:[#allocation2 + $0xa8] sm:$0xf]
    %v126 = vld [vmem:[#allocation2 + $0xac] sm:$0xf]
    %v127 = vld [vmem:[#allocation2 + $0xb0] sm:$0xf]
    %v128 = vld [vmem:[#allocation2 + $0xb4] sm:$0xf]
    %v129 = vld [vmem:[#allocation2 + $0xb8] sm:$0xf]
    %v130 = vld [vmem:[#allocation2 + $0xbc] sm:$0xf]
    %v131 = vld [vmem:[#allocation2 + $0xc0] sm:$0xf]
    %v132 = vld [vmem:[#allocation2 + $0xc4] sm:$0xf]
    %v133 = vld [vmem:[#allocation2 + $0xc8] sm:$0xf]
    %v134 = vld [vmem:[#allocation2 + $0xcc] sm:$0xf]
    %v135 = vld [vmem:[#allocation2 + $0xd0] sm:$0xf]
    %v136 = vld [vmem:[#allocation2 + $0xd4] sm:$0xf]
    %v137 = vld [vmem:[#allocation2 + $0xd8] sm:$0xf]
    %v138 = vld [vmem:[#allocation2 + $0xdc] sm:$0xf]
    %v139 = vld [vmem:[#allocation2 + $0xe0] sm:$0xf]
    %v140 = vld [vmem:[#allocation2 + $0xe4] sm:$0xf]
    %v141 = vld [vmem:[#allocation2 + $0xe8] sm:$0xf]
    %v142 = vld [vmem:[#allocation2 + $0xec] sm:$0xf]
    %v143 = vld [vmem:[#allocation2 + $0xf0] sm:$0xf]
    %v144 = vld [vmem:[#allocation2 + $0xf4] sm:$0xf]
    %v145 = vld [vmem:[#allocation2 + $0xf8] sm:$0xf]
    %v146 = vld [vmem:[#allocation2 + $0xfc] sm:$0xf]
    %v147 = vld [vmem:[#allocation5] sm:$0xf]
    %v148 = vld [vmem:[#allocation5 + $0x4] sm:$0xf]
    %v149 = vld [vmem:[#allocation5 + $0x8] sm:$0xf]
    %v150 = vld [vmem:[#allocation5 + $0xc] sm:$0xf]
    %v151 = vld [vmem:[#allocation5 + $0x10] sm:$0xf]
    %v152 = vld [vmem:[#allocation5 + $0x14] sm:$0xf]
    %v153 = vld [vmem:[#allocation5 + $0x18] sm:$0xf]
    %v154 = vld [vmem:[#allocation5 + $0x1c] sm:$0xf]
    %v155 = vld [vmem:[#allocation5 + $0x20] sm:$0xf]
    %v156 = vld [vmem:[#allocation5 + $0x24] sm:$0xf]
    %v157 = vld [vmem:[#allocation5 + $0x28] sm:$0xf]
    %v158 = vld [vmem:[#allocation5 + $0x2c] sm:$0xf]
    %v159 = vld [vmem:[#allocation5 + $0x30] sm:$0xf]
    %v160 = vld [vmem:[#allocation5 + $0x34] sm:$0xf]
    %v161 = vld [vmem:[#allocation5 + $0x38] sm:$0xf]
    %v162 = vld [vmem:[#allocation5 + $0x3c] sm:$0xf]
    %v163 = vld [vmem:[%s2] sm:$0x1]
    %v165 = vlaneseq
    %v166 = vshrl.u32 %v165, 7
    %v167 = vsub.s32 0, %v166
    %v168 = vrot.slane %v163, %v167
    %v234 = vunpack.c.l.b16 %v83
    %v235 = vunpack.c.l.b16 %v84
    %v236 = vunpack.c.l.b16 %v85
    %v237 = vunpack.c.l.b16 %v86
    %v238 = vunpack.c.l.b16 %v87
    %v239 = vunpack.c.l.b16 %v88
    %v240 = vunpack.c.l.b16 %v89
    %v241 = vunpack.c.l.b16 %v90
    %v242 = vunpack.c.l.b16 %v91
    %v243 = vunpack.c.l.b16 %v92
    %v244 = vunpack.c.l.b16 %v93
    %v245 = vunpack.c.l.b16 %v94
    %v246 = vunpack.c.l.b16 %v95
    %v247 = vunpack.c.l.b16 %v96
    %v248 = vunpack.c.l.b16 %v97
    %v249 = vunpack.c.l.b16 %v98
    %v250 = vunpack.c.l.b16 %v99
    %v251 = vunpack.c.l.b16 %v100
    %v252 = vunpack.c.l.b16 %v101
    %v253 = vunpack.c.l.b16 %v102
    %v254 = vunpack.c.l.b16 %v103
    %v255 = vunpack.c.l.b16 %v104
    %v256 = vunpack.c.l.b16 %v105
    %v257 = vunpack.c.l.b16 %v106
    %v258 = vunpack.c.l.b16 %v107
    %v259 = vunpack.c.l.b16 %v108
    %v260 = vunpack.c.l.b16 %v109
    %v261 = vunpack.c.l.b16 %v110
    %v262 = vunpack.c.l.b16 %v111
    %v263 = vunpack.c.l.b16 %v112
    %v264 = vunpack.c.l.b16 %v113
    %v265 = vunpack.c.l.b16 %v114
    %v266 = vunpack.c.l.b16 %v115
    %v267 = vunpack.c.l.b16 %v116
    %v268 = vunpack.c.l.b16 %v117
    %v269 = vunpack.c.l.b16 %v118
    %v270 = vunpack.c.l.b16 %v119
    %v271 = vunpack.c.l.b16 %v120
    %v272 = vunpack.c.l.b16 %v121
    %v273 = vunpack.c.l.b16 %v122
    %v274 = vunpack.c.l.b16 %v123
    %v275 = vunpack.c.l.b16 %v124
    %v276 = vunpack.c.l.b16 %v125
    %v277 = vunpack.c.l.b16 %v126
    %v278 = vunpack.c.l.b16 %v127
    %v279 = vunpack.c.l.b16 %v128
    %v280 = vunpack.c.l.b16 %v129
    %v281 = vunpack.c.l.b16 %v130
    %v282 = vunpack.c.l.b16 %v131
    %v283 = vunpack.c.l.b16 %v132
    %v284 = vunpack.c.l.b16 %v133
    %v285 = vunpack.c.l.b16 %v134
    %v286 = vunpack.c.l.b16 %v135
    %v287 = vunpack.c.l.b16 %v136
    %v288 = vunpack.c.l.b16 %v137
    %v289 = vunpack.c.l.b16 %v138
    %v290 = vunpack.c.l.b16 %v139
    %v291 = vunpack.c.l.b16 %v140
    %v292 = vunpack.c.l.b16 %v141
    %v293 = vunpack.c.l.b16 %v142
    %v294 = vunpack.c.l.b16 %v143
    %v295 = vunpack.c.l.b16 %v144
    %v296 = vunpack.c.l.b16 %v145
    %v297 = vunpack.c.l.b16 %v146
    %v298 = vpack.c.b16 %v235, %v234
    %v299 = vpack.c.b16 %v237, %v236
    %v300 = vpack.c.b16 %v239, %v238
    %v301 = vpack.c.b16 %v241, %v240
    %v302 = vpack.c.b16 %v243, %v242
    %v303 = vpack.c.b16 %v245, %v244
    %v304 = vpack.c.b16 %v247, %v246
    %v305 = vpack.c.b16 %v249, %v248
    %v306 = vpack.c.b16 %v251, %v250
    %v307 = vpack.c.b16 %v253, %v252
    %v308 = vpack.c.b16 %v255, %v254
    %v309 = vpack.c.b16 %v257, %v256
    %v310 = vpack.c.b16 %v259, %v258
    %v311 = vpack.c.b16 %v261, %v260
    %v312 = vpack.c.b16 %v263, %v262
    %v313 = vpack.c.b16 %v265, %v264
    %v314 = vpack.c.b16 %v267, %v266
    %v315 = vpack.c.b16 %v269, %v268
    %v316 = vpack.c.b16 %v271, %v270
    %v317 = vpack.c.b16 %v273, %v272
    %v318 = vpack.c.b16 %v275, %v274
    %v319 = vpack.c.b16 %v277, %v276
    %v320 = vpack.c.b16 %v279, %v278
    %v321 = vpack.c.b16 %v281, %v280
    %v322 = vpack.c.b16 %v283, %v282
    %v323 = vpack.c.b16 %v285, %v284
    %v324 = vpack.c.b16 %v287, %v286
    %v325 = vpack.c.b16 %v289, %v288
    %v326 = vpack.c.b16 %v291, %v290
    %v327 = vpack.c.b16 %v293, %v292
    %v328 = vpack.c.b16 %v295, %v294
    %v329 = vpack.c.b16 %v297, %v296
    %v378 = vunpack.c.l.b16 %v147
    %v379 = vunpack.c.l.b16 %v148
    %v380 = vunpack.c.l.b16 %v149
    %v381 = vunpack.c.l.b16 %v150
    %v382 = vunpack.c.l.b16 %v151
    %v383 = vunpack.c.l.b16 %v152
    %v384 = vunpack.c.l.b16 %v153
    %v385 = vunpack.c.l.b16 %v154
    %v386 = vunpack.c.l.b16 %v155
    %v387 = vunpack.c.l.b16 %v156
    %v388 = vunpack.c.l.b16 %v157
    %v389 = vunpack.c.l.b16 %v158
    %v390 = vunpack.c.l.b16 %v159
    %v391 = vunpack.c.l.b16 %v160
    %v392 = vunpack.c.l.b16 %v161
    %v393 = vunpack.c.l.b16 %v162
    %v394 = vpack.c.b16 %v379, %v378
    %v395 = vpack.c.b16 %v381, %v380
    %v396 = vpack.c.b16 %v383, %v382
    %v397 = vpack.c.b16 %v385, %v384
    %v398 = vpack.c.b16 %v387, %v386
    %v399 = vpack.c.b16 %v389, %v388
    %v400 = vpack.c.b16 %v391, %v390
    %v401 = vpack.c.b16 %v393, %v392
    %410 = vmatprep.subr.bf16.mxu0 0
    %411 = vmatpush1.bf16.msra.mxu0 %v394
    %412 = vmatprep.subr.bf16.mxu0 0
    %413 = vmatpush1.bf16.msra.mxu0 %v395
    %414 = vmatprep.subr.bf16.mxu0 0
    %415 = vmatpush1.bf16.msra.mxu0 %v396
    %416 = vmatprep.subr.bf16.mxu0 0
    %417 = vmatpush1.bf16.msra.mxu0 %v397
    %418 = vmatprep.subr.bf16.mxu0 0
    %419 = vmatpush1.bf16.msra.mxu0 %v398
    %420 = vmatprep.subr.bf16.mxu0 0
    %421 = vmatpush1.bf16.msra.mxu0 %v399
    %422 = vmatprep.subr.bf16.mxu0 0
    %423 = vmatpush1.bf16.msra.mxu0 %v400
    %424 = vmatprep.subr.bf16.mxu0 0
    %425 = vmatpush1.bf16.msra.mxu0 %v401
    %426 = vmatprep.subr.bf16.mxu0 0
    %427 = vmatpush1.bf16.msra.mxu0 0
    %428 = vmatprep.subr.bf16.mxu0 0
    %429 = vmatpush1.bf16.msra.mxu0 0
    %430 = vmatprep.subr.bf16.mxu0 0
    %431 = vmatpush1.bf16.msra.mxu0 0
    %432 = vmatprep.subr.bf16.mxu0 0
    %433 = vmatpush1.bf16.msra.mxu0 0
    %434 = vmatprep.subr.bf16.mxu0 0
    %435 = vmatpush1.bf16.msra.mxu0 0
    %436 = vmatprep.subr.bf16.mxu0 0
    %437 = vmatpush1.bf16.msra.mxu0 0
    %438 = vmatprep.subr.bf16.mxu0 0
    %439 = vmatpush1.bf16.msra.mxu0 0
    %440 = vmatprep.subr.bf16.mxu0 0
    %441 = vmatpush1.bf16.msra.mxu0 0
    %442 = vmatprep.mubr.bf16.mxu0 0
    %443 = vmatmul.mubr.bf16.gmra.mrb[0].mxu0 %v298
    %v444 = vpop.f32.mrb[0].mxu0
    %v445 = vadd.f32 %v168, %v444
    %v446 = vpop.f32.mrb[0].mxu0
    %v447 = vpop.f32.mrb[0].mxu0
    %v448 = vadd.f32 %v168, %v447
    %v449 = vpop.f32.mrb[0].mxu0
    %450 = vmatprep.mubr.bf16.mxu0 0
    %451 = vmatmul.mubr.bf16.gmra.mrb[0].mxu0 %v299
    %v452 = vpop.f32.mrb[0].mxu0
    %v453 = vadd.f32 %v168, %v452
    %v454 = vpop.f32.mrb[0].mxu0
    %v455 = vpop.f32.mrb[0].mxu0
    %v456 = vadd.f32 %v168, %v455
    %v457 = vpop.f32.mrb[0].mxu0
    %458 = vmatprep.mubr.bf16.mxu0 0
    %459 = vmatmul.mubr.bf16.gmra.mrb[0].mxu0 %v300
    %v460 = vpop.f32.mrb[0].mxu0
    %v461 = vadd.f32 %v168, %v460
    %v462 = vpop.f32.mrb[0].mxu0
    %v463 = vpop.f32.mrb[0].mxu0
    %v464 = vadd.f32 %v168, %v463
    %v465 = vpop.f32.mrb[0].mxu0
    %466 = vmatprep.mubr.bf16.mxu0 0
    %467 = vmatmul.mubr.bf16.gmra.mrb[0].mxu0 %v301
    %v468 = vpop.f32.mrb[0].mxu0
    %v469 = vadd.f32 %v168, %v468
    %v470 = vpop.f32.mrb[0].mxu0
    %v471 = vpop.f32.mrb[0].mxu0
    %v472 = vadd.f32 %v168, %v471
    %v473 = vpop.f32.mrb[0].mxu0
    %474 = vmatprep.mubr.bf16.mxu0 0
    %475 = vmatmul.mubr.bf16.gmra.mrb[0].mxu0 %v302
    %v476 = vpop.f32.mrb[0].mxu0
    %v477 = vadd.f32 %v168, %v476
    %v478 = vpop.f32.mrb[0].mxu0
    %v479 = vpop.f32.mrb[0].mxu0
    %v480 = vadd.f32 %v168, %v479
    %v481 = vpop.f32.mrb[0].mxu0
    %482 = vmatprep.mubr.bf16.mxu0 0
    %483 = vmatmul.mubr.bf16.gmra.mrb[0].mxu0 %v303
    %v484 = vpop.f32.mrb[0].mxu0
    %v485 = vadd.f32 %v168, %v484
    %v486 = vpop.f32.mrb[0].mxu0
    %v487 = vpop.f32.mrb[0].mxu0
    %v488 = vadd.f32 %v168, %v487
    %v489 = vpop.f32.mrb[0].mxu0
    %490 = vmatprep.mubr.bf16.mxu0 0
    %491 = vmatmul.mubr.bf16.gmra.mrb[0].mxu0 %v304
    %v492 = vpop.f32.mrb[0].mxu0
    %v493 = vadd.f32 %v168, %v492
    %v494 = vpop.f32.mrb[0].mxu0
    %v495 = vpop.f32.mrb[0].mxu0
    %v496 = vadd.f32 %v168, %v495
    %v497 = vpop.f32.mrb[0].mxu0
    %498 = vmatprep.mubr.bf16.mxu0 0
    %499 = vmatmul.mubr.bf16.gmra.mrb[0].mxu0 %v305
    %v500 = vpop.f32.mrb[0].mxu0
    %v501 = vadd.f32 %v168, %v500
    %v502 = vpop.f32.mrb[0].mxu0
    %v503 = vpop.f32.mrb[0].mxu0
    %v504 = vadd.f32 %v168, %v503
    %v505 = vpop.f32.mrb[0].mxu0
    %506 = vmatprep.mubr.bf16.mxu0 0
    %507 = vmatmul.mubr.bf16.gmra.mrb[0].mxu0 %v306
    %v508 = vpop.f32.mrb[0].mxu0
    %v509 = vadd.f32 %v168, %v508
    %v510 = vpop.f32.mrb[0].mxu0
    %v511 = vpop.f32.mrb[0].mxu0
    %v512 = vadd.f32 %v168, %v511
    %v513 = vpop.f32.mrb[0].mxu0
    %514 = vmatprep.mubr.bf16.mxu0 0
    %515 = vmatmul.mubr.bf16.gmra.mrb[0].mxu0 %v307
    %v516 = vpop.f32.mrb[0].mxu0
    %v517 = vadd.f32 %v168, %v516
    %v518 = vpop.f32.mrb[0].mxu0
    %v519 = vpop.f32.mrb[0].mxu0
    %v520 = vadd.f32 %v168, %v519
    %v521 = vpop.f32.mrb[0].mxu0
    %522 = vmatprep.mubr.bf16.mxu0 0
    %523 = vmatmul.mubr.bf16.gmra.mrb[0].mxu0 %v308
    %v524 = vpop.f32.mrb[0].mxu0
    %v525 = vadd.f32 %v168, %v524
    %v526 = vpop.f32.mrb[0].mxu0
    %v527 = vpop.f32.mrb[0].mxu0
    %v528 = vadd.f32 %v168, %v527
    %v529 = vpop.f32.mrb[0].mxu0
    %530 = vmatprep.mubr.bf16.mxu0 0
    %531 = vmatmul.mubr.bf16.gmra.mrb[0].mxu0 %v309
    %v532 = vpop.f32.mrb[0].mxu0
    %v533 = vadd.f32 %v168, %v532
    %v534 = vpop.f32.mrb[0].mxu0
    %v535 = vpop.f32.mrb[0].mxu0
    %v536 = vadd.f32 %v168, %v535
    %v537 = vpop.f32.mrb[0].mxu0
    %538 = vmatprep.mubr.bf16.mxu0 0
    %539 = vmatmul.mubr.bf16.gmra.mrb[0].mxu0 %v310
    %v540 = vpop.f32.mrb[0].mxu0
    %v541 = vadd.f32 %v168, %v540
    %v542 = vpop.f32.mrb[0].mxu0
    %v543 = vpop.f32.mrb[0].mxu0
    %v544 = vadd.f32 %v168, %v543
    %v545 = vpop.f32.mrb[0].mxu0
    %546 = vmatprep.mubr.bf16.mxu0 0
    %547 = vmatmul.mubr.bf16.gmra.mrb[0].mxu0 %v311
    %v548 = vpop.f32.mrb[0].mxu0
    %v549 = vadd.f32 %v168, %v548
    %v550 = vpop.f32.mrb[0].mxu0
    %v551 = vpop.f32.mrb[0].mxu0
    %v552 = vadd.f32 %v168, %v551
    %v553 = vpop.f32.mrb[0].mxu0
    %554 = vmatprep.mubr.bf16.mxu0 0
    %555 = vmatmul.mubr.bf16.gmra.mrb[0].mxu0 %v312
    %v556 = vpop.f32.mrb[0].mxu0
    %v557 = vadd.f32 %v168, %v556
    %v558 = vpop.f32.mrb[0].mxu0
    %v559 = vpop.f32.mrb[0].mxu0
    %v560 = vadd.f32 %v168, %v559
    %v561 = vpop.f32.mrb[0].mxu0
    %562 = vmatprep.mubr.bf16.mxu0 0
    %563 = vmatmul.mubr.bf16.gmra.mrb[0].mxu0 %v313
    %v564 = vpop.f32.mrb[0].mxu0
    %v565 = vadd.f32 %v168, %v564
    %v566 = vpop.f32.mrb[0].mxu0
    %v567 = vpop.f32.mrb[0].mxu0
    %v568 = vadd.f32 %v168, %v567
    %v569 = vpop.f32.mrb[0].mxu0
    %570 = vmatprep.mubr.bf16.mxu0 0
    %571 = vmatmul.mubr.bf16.gmra.mrb[0].mxu0 %v314
    %v572 = vpop.f32.mrb[0].mxu0
    %v573 = vadd.f32 %v168, %v572
    %v574 = vpop.f32.mrb[0].mxu0
    %v575 = vpop.f32.mrb[0].mxu0
    %v576 = vadd.f32 %v168, %v575
    %v577 = vpop.f32.mrb[0].mxu0
    %578 = vmatprep.mubr.bf16.mxu0 0
    %579 = vmatmul.mubr.bf16.gmra.mrb[0].mxu0 %v315
    %v580 = vpop.f32.mrb[0].mxu0
    %v581 = vadd.f32 %v168, %v580
    %v582 = vpop.f32.mrb[0].mxu0
    %v583 = vpop.f32.mrb[0].mxu0
    %v584 = vadd.f32 %v168, %v583
    %v585 = vpop.f32.mrb[0].mxu0
    %586 = vmatprep.mubr.bf16.mxu0 0
    %587 = vmatmul.mubr.bf16.gmra.mrb[0].mxu0 %v316
    %v588 = vpop.f32.mrb[0].mxu0
    %v589 = vadd.f32 %v168, %v588
    %v590 = vpop.f32.mrb[0].mxu0
    %v591 = vpop.f32.mrb[0].mxu0
    %v592 = vadd.f32 %v168, %v591
    %v593 = vpop.f32.mrb[0].mxu0
    %594 = vmatprep.mubr.bf16.mxu0 0
    %595 = vmatmul.mubr.bf16.gmra.mrb[0].mxu0 %v317
    %v596 = vpop.f32.mrb[0].mxu0
    %v597 = vadd.f32 %v168, %v596
    %v598 = vpop.f32.mrb[0].mxu0
    %v599 = vpop.f32.mrb[0].mxu0
    %v600 = vadd.f32 %v168, %v599
    %v601 = vpop.f32.mrb[0].mxu0
    %602 = vmatprep.mubr.bf16.mxu0 0
    %603 = vmatmul.mubr.bf16.gmra.mrb[0].mxu0 %v318
    %v604 = vpop.f32.mrb[0].mxu0
    %v605 = vadd.f32 %v168, %v604
    %v606 = vpop.f32.mrb[0].mxu0
    %v607 = vpop.f32.mrb[0].mxu0
    %v608 = vadd.f32 %v168, %v607
    %v609 = vpop.f32.mrb[0].mxu0
    %610 = vmatprep.mubr.bf16.mxu0 0
    %611 = vmatmul.mubr.bf16.gmra.mrb[0].mxu0 %v319
    %v612 = vpop.f32.mrb[0].mxu0
    %v613 = vadd.f32 %v168, %v612
    %v614 = vpop.f32.mrb[0].mxu0
    %v615 = vpop.f32.mrb[0].mxu0
    %v616 = vadd.f32 %v168, %v615
    %v617 = vpop.f32.mrb[0].mxu0
    %618 = vmatprep.mubr.bf16.mxu0 0
    %619 = vmatmul.mubr.bf16.gmra.mrb[0].mxu0 %v320
    %v620 = vpop.f32.mrb[0].mxu0
    %v621 = vadd.f32 %v168, %v620
    %v622 = vpop.f32.mrb[0].mxu0
    %v623 = vpop.f32.mrb[0].mxu0
    %v624 = vadd.f32 %v168, %v623
    %v625 = vpop.f32.mrb[0].mxu0
    %626 = vmatprep.mubr.bf16.mxu0 0
    %627 = vmatmul.mubr.bf16.gmra.mrb[0].mxu0 %v321
    %v628 = vpop.f32.mrb[0].mxu0
    %v629 = vadd.f32 %v168, %v628
    %v630 = vpop.f32.mrb[0].mxu0
    %v631 = vpop.f32.mrb[0].mxu0
    %v632 = vadd.f32 %v168, %v631
    %v633 = vpop.f32.mrb[0].mxu0
    %634 = vmatprep.mubr.bf16.mxu0 0
    %635 = vmatmul.mubr.bf16.gmra.mrb[0].mxu0 %v322
    %v636 = vpop.f32.mrb[0].mxu0
    %v637 = vadd.f32 %v168, %v636
    %v638 = vpop.f32.mrb[0].mxu0
    %v639 = vpop.f32.mrb[0].mxu0
    %v640 = vadd.f32 %v168, %v639
    %v641 = vpop.f32.mrb[0].mxu0
    %642 = vmatprep.mubr.bf16.mxu0 0
    %643 = vmatmul.mubr.bf16.gmra.mrb[0].mxu0 %v323
    %v644 = vpop.f32.mrb[0].mxu0
    %v645 = vadd.f32 %v168, %v644
    %v646 = vpop.f32.mrb[0].mxu0
    %v647 = vpop.f32.mrb[0].mxu0
    %v648 = vadd.f32 %v168, %v647
    %v649 = vpop.f32.mrb[0].mxu0
    %650 = vmatprep.mubr.bf16.mxu0 0
    %651 = vmatmul.mubr.bf16.gmra.mrb[0].mxu0 %v324
    %v652 = vpop.f32.mrb[0].mxu0
    %v653 = vadd.f32 %v168, %v652
    %v654 = vpop.f32.mrb[0].mxu0
    %v655 = vpop.f32.mrb[0].mxu0
    %v656 = vadd.f32 %v168, %v655
    %v657 = vpop.f32.mrb[0].mxu0
    %658 = vmatprep.mubr.bf16.mxu0 0
    %659 = vmatmul.mubr.bf16.gmra.mrb[0].mxu0 %v325
    %v660 = vpop.f32.mrb[0].mxu0
    %v661 = vadd.f32 %v168, %v660
    %v662 = vpop.f32.mrb[0].mxu0
    %v663 = vpop.f32.mrb[0].mxu0
    %v664 = vadd.f32 %v168, %v663
    %v665 = vpop.f32.mrb[0].mxu0
    %666 = vmatprep.mubr.bf16.mxu0 0
    %667 = vmatmul.mubr.bf16.gmra.mrb[0].mxu0 %v326
    %v668 = vpop.f32.mrb[0].mxu0
    %v669 = vadd.f32 %v168, %v668
    %v670 = vpop.f32.mrb[0].mxu0
    %v671 = vpop.f32.mrb[0].mxu0
    %v672 = vadd.f32 %v168, %v671
    %v673 = vpop.f32.mrb[0].mxu0
    %674 = vmatprep.mubr.bf16.mxu0 0
    %675 = vmatmul.mubr.bf16.gmra.mrb[0].mxu0 %v327
    %v676 = vpop.f32.mrb[0].mxu0
    %v677 = vadd.f32 %v168, %v676
    %v678 = vpop.f32.mrb[0].mxu0
    %v679 = vpop.f32.mrb[0].mxu0
    %v680 = vadd.f32 %v168, %v679
    %v681 = vpop.f32.mrb[0].mxu0
    %682 = vmatprep.mubr.bf16.mxu0 0
    %683 = vmatmul.mubr.bf16.gmra.mrb[0].mxu0 %v328
    %v684 = vpop.f32.mrb[0].mxu0
    %v685 = vadd.f32 %v168, %v684
    %v686 = vpop.f32.mrb[0].mxu0
    %v687 = vpop.f32.mrb[0].mxu0
    %v688 = vadd.f32 %v168, %v687
    %v689 = vpop.f32.mrb[0].mxu0
    %690 = vmatprep.mubr.bf16.mxu0 0
    %691 = vmatmul.mubr.bf16.gmra.mrb[0].mxu0 %v329
    %v692 = vpop.f32.mrb[0].mxu0
    %v693 = vadd.f32 %v168, %v692
    %v694 = vpop.f32.mrb[0].mxu0
    %v695 = vpop.f32.mrb[0].mxu0
    %v696 = vadd.f32 %v168, %v695
    %v697 = vpop.f32.mrb[0].mxu0
    %698 = vdwg.mxu0
    %v699 = vmax.f32 %v445, 0.0
    %v700 = vmax.f32 %v448, 0.0
    %v701 = vmax.f32 %v453, 0.0
    %v702 = vmax.f32 %v456, 0.0
    %v703 = vmax.f32 %v461, 0.0
    %v704 = vmax.f32 %v464, 0.0
    %v705 = vmax.f32 %v469, 0.0
    %v706 = vmax.f32 %v472, 0.0
    %v707 = vmax.f32 %v477, 0.0
    %v708 = vmax.f32 %v480, 0.0
    %v709 = vmax.f32 %v485, 0.0
    %v710 = vmax.f32 %v488, 0.0
    %v711 = vmax.f32 %v493, 0.0
    %v712 = vmax.f32 %v496, 0.0
    %v713 = vmax.f32 %v501, 0.0
    %v714 = vmax.f32 %v504, 0.0
    %v715 = vmax.f32 %v509, 0.0
    %v716 = vmax.f32 %v512, 0.0
    %v717 = vmax.f32 %v517, 0.0
    %v718 = vmax.f32 %v520, 0.0
    %v719 = vmax.f32 %v525, 0.0
    %v720 = vmax.f32 %v528, 0.0
    %v721 = vmax.f32 %v533, 0.0
    %v722 = vmax.f32 %v536, 0.0
    %v723 = vmax.f32 %v541, 0.0
    %v724 = vmax.f32 %v544, 0.0
    %v725 = vmax.f32 %v549, 0.0
    %v726 = vmax.f32 %v552, 0.0
    %v727 = vmax.f32 %v557, 0.0
    %v728 = vmax.f32 %v560, 0.0
    %v729 = vmax.f32 %v565, 0.0
    %v730 = vmax.f32 %v568, 0.0
    %v731 = vmax.f32 %v573, 0.0
    %v732 = vmax.f32 %v576, 0.0
    %v733 = vmax.f32 %v581, 0.0
    %v734 = vmax.f32 %v584, 0.0
    %v735 = vmax.f32 %v589, 0.0
    %v736 = vmax.f32 %v592, 0.0
    %v737 = vmax.f32 %v597, 0.0
    %v738 = vmax.f32 %v600, 0.0
    %v739 = vmax.f32 %v605, 0.0
    %v740 = vmax.f32 %v608, 0.0
    %v741 = vmax.f32 %v613, 0.0
    %v742 = vmax.f32 %v616, 0.0
    %v743 = vmax.f32 %v621, 0.0
    %v744 = vmax.f32 %v624, 0.0
    %v745 = vmax.f32 %v629, 0.0
    %v746 = vmax.f32 %v632, 0.0
    %v747 = vmax.f32 %v637, 0.0
    %v748 = vmax.f32 %v640, 0.0
    %v749 = vmax.f32 %v645, 0.0
    %v750 = vmax.f32 %v648, 0.0
    %v751 = vmax.f32 %v653, 0.0
    %v752 = vmax.f32 %v656, 0.0
    %v753 = vmax.f32 %v661, 0.0
    %v754 = vmax.f32 %v664, 0.0
    %v755 = vmax.f32 %v669, 0.0
    %v756 = vmax.f32 %v672, 0.0
    %v757 = vmax.f32 %v677, 0.0
    %v758 = vmax.f32 %v680, 0.0
    %v759 = vmax.f32 %v685, 0.0
    %v760 = vmax.f32 %v688, 0.0
    %v761 = vmax.f32 %v693, 0.0
    %v762 = vmax.f32 %v696, 0.0
    %v763 = vpack.c.bf16 %v700, %v699
    %v764 = vpack.c.bf16 %v702, %v701
    %v765 = vpack.c.bf16 %v704, %v703
    %v766 = vpack.c.bf16 %v706, %v705
    %v767 = vpack.c.bf16 %v708, %v707
    %v768 = vpack.c.bf16 %v710, %v709
    %v769 = vpack.c.bf16 %v712, %v711
    %v770 = vpack.c.bf16 %v714, %v713
    %v771 = vpack.c.bf16 %v716, %v715
    %v772 = vpack.c.bf16 %v718, %v717
    %v773 = vpack.c.bf16 %v720, %v719
    %v774 = vpack.c.bf16 %v722, %v721
    %v775 = vpack.c.bf16 %v724, %v723
    %v776 = vpack.c.bf16 %v726, %v725
    %v777 = vpack.c.bf16 %v728, %v727
    %v778 = vpack.c.bf16 %v730, %v729
    %v779 = vpack.c.bf16 %v732, %v731
    %v780 = vpack.c.bf16 %v734, %v733
    %v781 = vpack.c.bf16 %v736, %v735
    %v782 = vpack.c.bf16 %v738, %v737
    %v783 = vpack.c.bf16 %v740, %v739
    %v784 = vpack.c.bf16 %v742, %v741
    %v785 = vpack.c.bf16 %v744, %v743
    %v786 = vpack.c.bf16 %v746, %v745
    %v787 = vpack.c.bf16 %v748, %v747
    %v788 = vpack.c.bf16 %v750, %v749
    %v789 = vpack.c.bf16 %v752, %v751
    %v790 = vpack.c.bf16 %v754, %v753
    %v791 = vpack.c.bf16 %v756, %v755
    %v792 = vpack.c.bf16 %v758, %v757
    %v793 = vpack.c.bf16 %v760, %v759
    %v794 = vpack.c.bf16 %v762, %v761
    %v795 = vld [vmem:[#allocation7] sm:$0xf]
    %v796 = vld [vmem:[#allocation7 + $0x4] sm:$0xf]
    %v797 = vld [vmem:[#allocation7 + $0x8] sm:$0xf]
    %v798 = vld [vmem:[#allocation7 + $0xc] sm:$0xf]
    %v799 = vld [vmem:[#allocation7 + $0x10] sm:$0xf]
    %v800 = vld [vmem:[#allocation7 + $0x14] sm:$0xf]
    %v801 = vld [vmem:[#allocation7 + $0x18] sm:$0xf]
    %v802 = vld [vmem:[#allocation7 + $0x1c] sm:$0xf]
    %v803 = vld [vmem:[#allocation7 + $0x20] sm:$0xf]
    %v804 = vld [vmem:[#allocation7 + $0x24] sm:$0xf]
    %v805 = vld [vmem:[#allocation7 + $0x28] sm:$0xf]
    %v806 = vld [vmem:[#allocation7 + $0x2c] sm:$0xf]
    %v807 = vld [vmem:[#allocation7 + $0x30] sm:$0xf]
    %v808 = vld [vmem:[#allocation7 + $0x34] sm:$0xf]
    %v809 = vld [vmem:[#allocation7 + $0x38] sm:$0xf]
    %v810 = vld [vmem:[#allocation7 + $0x3c] sm:$0xf]
    %v811 = vld [vmem:[%s4] sm:$0x1]
    %v813 = vlaneseq
    %v814 = vshrl.u32 %v813, 7
    %v815 = vsub.s32 0, %v814
    %v816 = vrot.slane %v811, %v815
    %v834 = vunpack.c.l.b16 %v795
    %v835 = vunpack.c.l.b16 %v796
    %v836 = vunpack.c.l.b16 %v797
    %v837 = vunpack.c.l.b16 %v798
    %v838 = vunpack.c.l.b16 %v799
    %v839 = vunpack.c.l.b16 %v800
    %v840 = vunpack.c.l.b16 %v801
    %v841 = vunpack.c.l.b16 %v802
    %v842 = vunpack.c.l.b16 %v803
    %v843 = vunpack.c.l.b16 %v804
    %v844 = vunpack.c.l.b16 %v805
    %v845 = vunpack.c.l.b16 %v806
    %v846 = vunpack.c.l.b16 %v807
    %v847 = vunpack.c.l.b16 %v808
    %v848 = vunpack.c.l.b16 %v809
    %v849 = vunpack.c.l.b16 %v810
    %v850 = vpack.c.b16 %v835, %v834
    %v851 = vpack.c.b16 %v837, %v836
    %v852 = vpack.c.b16 %v839, %v838
    %v853 = vpack.c.b16 %v841, %v840
    %v854 = vpack.c.b16 %v843, %v842
    %v855 = vpack.c.b16 %v845, %v844
    %v856 = vpack.c.b16 %v847, %v846
    %v857 = vpack.c.b16 %v849, %v848
    %866 = vmatprep.subr.bf16.mxu0 0
    %867 = vmatpush1.bf16.msra.mxu0 %v850
    %868 = vmatprep.subr.bf16.mxu0 0
    %869 = vmatpush1.bf16.msra.mxu0 %v851
    %870 = vmatprep.subr.bf16.mxu0 0
    %871 = vmatpush1.bf16.msra.mxu0 %v852
    %872 = vmatprep.subr.bf16.mxu0 0
    %873 = vmatpush1.bf16.msra.mxu0 %v853
    %874 = vmatprep.subr.bf16.mxu0 0
    %875 = vmatpush1.bf16.msra.mxu0 %v854
    %876 = vmatprep.subr.bf16.mxu0 0
    %877 = vmatpush1.bf16.msra.mxu0 %v855
    %878 = vmatprep.subr.bf16.mxu0 0
    %879 = vmatpush1.bf16.msra.mxu0 %v856
    %880 = vmatprep.subr.bf16.mxu0 0
    %881 = vmatpush1.bf16.msra.mxu0 %v857
    %882 = vmatprep.subr.bf16.mxu0 0
    %883 = vmatpush1.bf16.msra.mxu0 0
    %884 = vmatprep.subr.bf16.mxu0 0
    %885 = vmatpush1.bf16.msra.mxu0 0
    %886 = vmatprep.subr.bf16.mxu0 0
    %887 = vmatpush1.bf16.msra.mxu0 0
    %888 = vmatprep.subr.bf16.mxu0 0
    %889 = vmatpush1.bf16.msra.mxu0 0
    %890 = vmatprep.subr.bf16.mxu0 0
    %891 = vmatpush1.bf16.msra.mxu0 0
    %892 = vmatprep.subr.bf16.mxu0 0
    %893 = vmatpush1.bf16.msra.mxu0 0
    %894 = vmatprep.subr.bf16.mxu0 0
    %895 = vmatpush1.bf16.msra.mxu0 0
    %896 = vmatprep.subr.bf16.mxu0 0
    %897 = vmatpush1.bf16.msra.mxu0 0
    %898 = vmatprep.mubr.bf16.mxu0 0
    %899 = vmatmul.mubr.bf16.gmra.mrb[0].mxu0 %v763
    %v900 = vpop.f32.mrb[0].mxu0
    %v901 = vadd.f32 %v816, %v900
    %v902 = vpop.f32.mrb[0].mxu0
    %v903 = vpop.f32.mrb[0].mxu0
    %v904 = vadd.f32 %v816, %v903
    %v905 = vpop.f32.mrb[0].mxu0
    %906 = vmatprep.mubr.bf16.mxu0 0
    %907 = vmatmul.mubr.bf16.gmra.mrb[0].mxu0 %v764
    %v908 = vpop.f32.mrb[0].mxu0
    %v909 = vadd.f32 %v816, %v908
    %v910 = vpop.f32.mrb[0].mxu0
    %v911 = vpop.f32.mrb[0].mxu0
    %v912 = vadd.f32 %v816, %v911
    %v913 = vpop.f32.mrb[0].mxu0
    %914 = vmatprep.mubr.bf16.mxu0 0
    %915 = vmatmul.mubr.bf16.gmra.mrb[0].mxu0 %v765
    %v916 = vpop.f32.mrb[0].mxu0
    %v917 = vadd.f32 %v816, %v916
    %v918 = vpop.f32.mrb[0].mxu0
    %v919 = vpop.f32.mrb[0].mxu0
    %v920 = vadd.f32 %v816, %v919
    %v921 = vpop.f32.mrb[0].mxu0
    %922 = vmatprep.mubr.bf16.mxu0 0
    %923 = vmatmul.mubr.bf16.gmra.mrb[0].mxu0 %v766
    %v924 = vpop.f32.mrb[0].mxu0
    %v925 = vadd.f32 %v816, %v924
    %v926 = vpop.f32.mrb[0].mxu0
    %v927 = vpop.f32.mrb[0].mxu0
    %v928 = vadd.f32 %v816, %v927
    %v929 = vpop.f32.mrb[0].mxu0
    %930 = vmatprep.mubr.bf16.mxu0 0
    %931 = vmatmul.mubr.bf16.gmra.mrb[0].mxu0 %v767
    %v932 = vpop.f32.mrb[0].mxu0
    %v933 = vadd.f32 %v816, %v932
    %v934 = vpop.f32.mrb[0].mxu0
    %v935 = vpop.f32.mrb[0].mxu0
    %v936 = vadd.f32 %v816, %v935
    %v937 = vpop.f32.mrb[0].mxu0
    %938 = vmatprep.mubr.bf16.mxu0 0
    %939 = vmatmul.mubr.bf16.gmra.mrb[0].mxu0 %v768
    %v940 = vpop.f32.mrb[0].mxu0
    %v941 = vadd.f32 %v816, %v940
    %v942 = vpop.f32.mrb[0].mxu0
    %v943 = vpop.f32.mrb[0].mxu0
    %v944 = vadd.f32 %v816, %v943
    %v945 = vpop.f32.mrb[0].mxu0
    %946 = vmatprep.mubr.bf16.mxu0 0
    %947 = vmatmul.mubr.bf16.gmra.mrb[0].mxu0 %v769
    %v948 = vpop.f32.mrb[0].mxu0
    %v949 = vadd.f32 %v816, %v948
    %v950 = vpop.f32.mrb[0].mxu0
    %v951 = vpop.f32.mrb[0].mxu0
    %v952 = vadd.f32 %v816, %v951
    %v953 = vpop.f32.mrb[0].mxu0
    %954 = vmatprep.mubr.bf16.mxu0 0
    %955 = vmatmul.mubr.bf16.gmra.mrb[0].mxu0 %v770
    %v956 = vpop.f32.mrb[0].mxu0
    %v957 = vadd.f32 %v816, %v956
    %v958 = vpop.f32.mrb[0].mxu0
    %v959 = vpop.f32.mrb[0].mxu0
    %v960 = vadd.f32 %v816, %v959
    %v961 = vpop.f32.mrb[0].mxu0
    %962 = vmatprep.mubr.bf16.mxu0 0
    %963 = vmatmul.mubr.bf16.gmra.mrb[0].mxu0 %v771
    %v964 = vpop.f32.mrb[0].mxu0
    %v965 = vadd.f32 %v816, %v964
    %v966 = vpop.f32.mrb[0].mxu0
    %v967 = vpop.f32.mrb[0].mxu0
    %v968 = vadd.f32 %v816, %v967
    %v969 = vpop.f32.mrb[0].mxu0
    %970 = vmatprep.mubr.bf16.mxu0 0
    %971 = vmatmul.mubr.bf16.gmra.mrb[0].mxu0 %v772
    %v972 = vpop.f32.mrb[0].mxu0
    %v973 = vadd.f32 %v816, %v972
    %v974 = vpop.f32.mrb[0].mxu0
    %v975 = vpop.f32.mrb[0].mxu0
    %v976 = vadd.f32 %v816, %v975
    %v977 = vpop.f32.mrb[0].mxu0
    %978 = vmatprep.mubr.bf16.mxu0 0
    %979 = vmatmul.mubr.bf16.gmra.mrb[0].mxu0 %v773
    %v980 = vpop.f32.mrb[0].mxu0
    %v981 = vadd.f32 %v816, %v980
    %v982 = vpop.f32.mrb[0].mxu0
    %v983 = vpop.f32.mrb[0].mxu0
    %v984 = vadd.f32 %v816, %v983
    %v985 = vpop.f32.mrb[0].mxu0
    %986 = vmatprep.mubr.bf16.mxu0 0
    %987 = vmatmul.mubr.bf16.gmra.mrb[0].mxu0 %v774
    %v988 = vpop.f32.mrb[0].mxu0
    %v989 = vadd.f32 %v816, %v988
    %v990 = vpop.f32.mrb[0].mxu0
    %v991 = vpop.f32.mrb[0].mxu0
    %v992 = vadd.f32 %v816, %v991
    %v993 = vpop.f32.mrb[0].mxu0
    %994 = vmatprep.mubr.bf16.mxu0 0
    %995 = vmatmul.mubr.bf16.gmra.mrb[0].mxu0 %v775
    %v996 = vpop.f32.mrb[0].mxu0
    %v997 = vadd.f32 %v816, %v996
    %v998 = vpop.f32.mrb[0].mxu0
    %v999 = vpop.f32.mrb[0].mxu0
    %v1000 = vadd.f32 %v816, %v999
    %v1001 = vpop.f32.mrb[0].mxu0
    %1002 = vmatprep.mubr.bf16.mxu0 0
    %1003 = vmatmul.mubr.bf16.gmra.mrb[0].mxu0 %v776
    %v1004 = vpop.f32.mrb[0].mxu0
    %v1005 = vadd.f32 %v816, %v1004
    %v1006 = vpop.f32.mrb[0].mxu0
    %v1007 = vpop.f32.mrb[0].mxu0
    %v1008 = vadd.f32 %v816, %v1007
    %v1009 = vpop.f32.mrb[0].mxu0
    %1010 = vmatprep.mubr.bf16.mxu0 0
    %1011 = vmatmul.mubr.bf16.gmra.mrb[0].mxu0 %v777
    %v1012 = vpop.f32.mrb[0].mxu0
    %v1013 = vadd.f32 %v816, %v1012
    %v1014 = vpop.f32.mrb[0].mxu0
    %v1015 = vpop.f32.mrb[0].mxu0
    %v1016 = vadd.f32 %v816, %v1015
    %v1017 = vpop.f32.mrb[0].mxu0
    %1018 = vmatprep.mubr.bf16.mxu0 0
    %1019 = vmatmul.mubr.bf16.gmra.mrb[0].mxu0 %v778
    %v1020 = vpop.f32.mrb[0].mxu0
    %v1021 = vadd.f32 %v816, %v1020
    %v1022 = vpop.f32.mrb[0].mxu0
    %v1023 = vpop.f32.mrb[0].mxu0
    %v1024 = vadd.f32 %v816, %v1023
    %v1025 = vpop.f32.mrb[0].mxu0
    %1026 = vmatprep.mubr.bf16.mxu0 0
    %1027 = vmatmul.mubr.bf16.gmra.mrb[0].mxu0 %v779
    %v1028 = vpop.f32.mrb[0].mxu0
    %v1029 = vadd.f32 %v816, %v1028
    %v1030 = vpop.f32.mrb[0].mxu0
    %v1031 = vpop.f32.mrb[0].mxu0
    %v1032 = vadd.f32 %v816, %v1031
    %v1033 = vpop.f32.mrb[0].mxu0
    %1034 = vmatprep.mubr.bf16.mxu0 0
    %1035 = vmatmul.mubr.bf16.gmra.mrb[0].mxu0 %v780
    %v1036 = vpop.f32.mrb[0].mxu0
    %v1037 = vadd.f32 %v816, %v1036
    %v1038 = vpop.f32.mrb[0].mxu0
    %v1039 = vpop.f32.mrb[0].mxu0
    %v1040 = vadd.f32 %v816, %v1039
    %v1041 = vpop.f32.mrb[0].mxu0
    %1042 = vmatprep.mubr.bf16.mxu0 0
    %1043 = vmatmul.mubr.bf16.gmra.mrb[0].mxu0 %v781
    %v1044 = vpop.f32.mrb[0].mxu0
    %v1045 = vadd.f32 %v816, %v1044
    %v1046 = vpop.f32.mrb[0].mxu0
    %v1047 = vpop.f32.mrb[0].mxu0
    %v1048 = vadd.f32 %v816, %v1047
    %v1049 = vpop.f32.mrb[0].mxu0
    %1050 = vmatprep.mubr.bf16.mxu0 0
    %1051 = vmatmul.mubr.bf16.gmra.mrb[0].mxu0 %v782
    %v1052 = vpop.f32.mrb[0].mxu0
    %v1053 = vadd.f32 %v816, %v1052
    %v1054 = vpop.f32.mrb[0].mxu0
    %v1055 = vpop.f32.mrb[0].mxu0
    %v1056 = vadd.f32 %v816, %v1055
    %v1057 = vpop.f32.mrb[0].mxu0
    %1058 = vmatprep.mubr.bf16.mxu0 0
    %1059 = vmatmul.mubr.bf16.gmra.mrb[0].mxu0 %v783
    %v1060 = vpop.f32.mrb[0].mxu0
    %v1061 = vadd.f32 %v816, %v1060
    %v1062 = vpop.f32.mrb[0].mxu0
    %v1063 = vpop.f32.mrb[0].mxu0
    %v1064 = vadd.f32 %v816, %v1063
    %v1065 = vpop.f32.mrb[0].mxu0
    %1066 = vmatprep.mubr.bf16.mxu0 0
    %1067 = vmatmul.mubr.bf16.gmra.mrb[0].mxu0 %v784
    %v1068 = vpop.f32.mrb[0].mxu0
    %v1069 = vadd.f32 %v816, %v1068
    %v1070 = vpop.f32.mrb[0].mxu0
    %v1071 = vpop.f32.mrb[0].mxu0
    %v1072 = vadd.f32 %v816, %v1071
    %v1073 = vpop.f32.mrb[0].mxu0
    %1074 = vmatprep.mubr.bf16.mxu0 0
    %1075 = vmatmul.mubr.bf16.gmra.mrb[0].mxu0 %v785
    %v1076 = vpop.f32.mrb[0].mxu0
    %v1077 = vadd.f32 %v816, %v1076
    %v1078 = vpop.f32.mrb[0].mxu0
    %v1079 = vpop.f32.mrb[0].mxu0
    %v1080 = vadd.f32 %v816, %v1079
    %v1081 = vpop.f32.mrb[0].mxu0
    %1082 = vmatprep.mubr.bf16.mxu0 0
    %1083 = vmatmul.mubr.bf16.gmra.mrb[0].mxu0 %v786
    %v1084 = vpop.f32.mrb[0].mxu0
    %v1085 = vadd.f32 %v816, %v1084
    %v1086 = vpop.f32.mrb[0].mxu0
    %v1087 = vpop.f32.mrb[0].mxu0
    %v1088 = vadd.f32 %v816, %v1087
    %v1089 = vpop.f32.mrb[0].mxu0
    %1090 = vmatprep.mubr.bf16.mxu0 0
    %1091 = vmatmul.mubr.bf16.gmra.mrb[0].mxu0 %v787
    %v1092 = vpop.f32.mrb[0].mxu0
    %v1093 = vadd.f32 %v816, %v1092
    %v1094 = vpop.f32.mrb[0].mxu0
    %v1095 = vpop.f32.mrb[0].mxu0
    %v1096 = vadd.f32 %v816, %v1095
    %v1097 = vpop.f32.mrb[0].mxu0
    %1098 = vmatprep.mubr.bf16.mxu0 0
    %1099 = vmatmul.mubr.bf16.gmra.mrb[0].mxu0 %v788
    %v1100 = vpop.f32.mrb[0].mxu0
    %v1101 = vadd.f32 %v816, %v1100
    %v1102 = vpop.f32.mrb[0].mxu0
    %v1103 = vpop.f32.mrb[0].mxu0
    %v1104 = vadd.f32 %v816, %v1103
    %v1105 = vpop.f32.mrb[0].mxu0
    %1106 = vmatprep.mubr.bf16.mxu0 0
    %1107 = vmatmul.mubr.bf16.gmra.mrb[0].mxu0 %v789
    %v1108 = vpop.f32.mrb[0].mxu0
    %v1109 = vadd.f32 %v816, %v1108
    %v1110 = vpop.f32.mrb[0].mxu0
    %v1111 = vpop.f32.mrb[0].mxu0
    %v1112 = vadd.f32 %v816, %v1111
    %v1113 = vpop.f32.mrb[0].mxu0
    %1114 = vmatprep.mubr.bf16.mxu0 0
    %1115 = vmatmul.mubr.bf16.gmra.mrb[0].mxu0 %v790
    %v1116 = vpop.f32.mrb[0].mxu0
    %v1117 = vadd.f32 %v816, %v1116
    %v1118 = vpop.f32.mrb[0].mxu0
    %v1119 = vpop.f32.mrb[0].mxu0
    %v1120 = vadd.f32 %v816, %v1119
    %v1121 = vpop.f32.mrb[0].mxu0
    %1122 = vmatprep.mubr.bf16.mxu0 0
    %1123 = vmatmul.mubr.bf16.gmra.mrb[0].mxu0 %v791
    %v1124 = vpop.f32.mrb[0].mxu0
    %v1125 = vadd.f32 %v816, %v1124
    %v1126 = vpop.f32.mrb[0].mxu0
    %v1127 = vpop.f32.mrb[0].mxu0
    %v1128 = vadd.f32 %v816, %v1127
    %v1129 = vpop.f32.mrb[0].mxu0
    %1130 = vmatprep.mubr.bf16.mxu0 0
    %1131 = vmatmul.mubr.bf16.gmra.mrb[0].mxu0 %v792
    %v1132 = vpop.f32.mrb[0].mxu0
    %v1133 = vadd.f32 %v816, %v1132
    %v1134 = vpop.f32.mrb[0].mxu0
    %v1135 = vpop.f32.mrb[0].mxu0
    %v1136 = vadd.f32 %v816, %v1135
    %v1137 = vpop.f32.mrb[0].mxu0
    %1138 = vmatprep.mubr.bf16.mxu0 0
    %1139 = vmatmul.mubr.bf16.gmra.mrb[0].mxu0 %v793
    %v1140 = vpop.f32.mrb[0].mxu0
    %v1141 = vadd.f32 %v816, %v1140
    %v1142 = vpop.f32.mrb[0].mxu0
    %v1143 = vpop.f32.mrb[0].mxu0
    %v1144 = vadd.f32 %v816, %v1143
    %v1145 = vpop.f32.mrb[0].mxu0
    %1146 = vmatprep.mubr.bf16.mxu0 0
    %1147 = vmatmul.mubr.bf16.gmra.mrb[0].mxu0 %v794
    %v1148 = vpop.f32.mrb[0].mxu0
    %v1149 = vadd.f32 %v816, %v1148
    %v1150 = vpop.f32.mrb[0].mxu0
    %v1151 = vpop.f32.mrb[0].mxu0
    %v1152 = vadd.f32 %v816, %v1151
    %v1153 = vpop.f32.mrb[0].mxu0
    %1154 = vdwg.mxu0
    %v1155 = vmax.f32 %v901, 0.0
    %v1156 = vmax.f32 %v904, 0.0
    %v1157 = vmax.f32 %v909, 0.0
    %v1158 = vmax.f32 %v912, 0.0
    %v1159 = vmax.f32 %v917, 0.0
    %v1160 = vmax.f32 %v920, 0.0
    %v1161 = vmax.f32 %v925, 0.0
    %v1162 = vmax.f32 %v928, 0.0
    %v1163 = vmax.f32 %v933, 0.0
    %v1164 = vmax.f32 %v936, 0.0
    %v1165 = vmax.f32 %v941, 0.0
    %v1166 = vmax.f32 %v944, 0.0
    %v1167 = vmax.f32 %v949, 0.0
    %v1168 = vmax.f32 %v952, 0.0
    %v1169 = vmax.f32 %v957, 0.0
    %v1170 = vmax.f32 %v960, 0.0
    %v1171 = vmax.f32 %v965, 0.0
    %v1172 = vmax.f32 %v968, 0.0
    %v1173 = vmax.f32 %v973, 0.0
    %v1174 = vmax.f32 %v976, 0.0
    %v1175 = vmax.f32 %v981, 0.0
    %v1176 = vmax.f32 %v984, 0.0
    %v1177 = vmax.f32 %v989, 0.0
    %v1178 = vmax.f32 %v992, 0.0
    %v1179 = vmax.f32 %v997, 0.0
    %v1180 = vmax.f32 %v1000, 0.0
    %v1181 = vmax.f32 %v1005, 0.0
    %v1182 = vmax.f32 %v1008, 0.0
    %v1183 = vmax.f32 %v1013, 0.0
    %v1184 = vmax.f32 %v1016, 0.0
    %v1185 = vmax.f32 %v1021, 0.0
    %v1186 = vmax.f32 %v1024, 0.0
    %v1187 = vmax.f32 %v1029, 0.0
    %v1188 = vmax.f32 %v1032, 0.0
    %v1189 = vmax.f32 %v1037, 0.0
    %v1190 = vmax.f32 %v1040, 0.0
    %v1191 = vmax.f32 %v1045, 0.0
    %v1192 = vmax.f32 %v1048, 0.0
    %v1193 = vmax.f32 %v1053, 0.0
    %v1194 = vmax.f32 %v1056, 0.0
    %v1195 = vmax.f32 %v1061, 0.0
    %v1196 = vmax.f32 %v1064, 0.0
    %v1197 = vmax.f32 %v1069, 0.0
    %v1198 = vmax.f32 %v1072, 0.0
    %v1199 = vmax.f32 %v1077, 0.0
    %v1200 = vmax.f32 %v1080, 0.0
    %v1201 = vmax.f32 %v1085, 0.0
    %v1202 = vmax.f32 %v1088, 0.0
    %v1203 = vmax.f32 %v1093, 0.0
    %v1204 = vmax.f32 %v1096, 0.0
    %v1205 = vmax.f32 %v1101, 0.0
    %v1206 = vmax.f32 %v1104, 0.0
    %v1207 = vmax.f32 %v1109, 0.0
    %v1208 = vmax.f32 %v1112, 0.0
    %v1209 = vmax.f32 %v1117, 0.0
    %v1210 = vmax.f32 %v1120, 0.0
    %v1211 = vmax.f32 %v1125, 0.0
    %v1212 = vmax.f32 %v1128, 0.0
    %v1213 = vmax.f32 %v1133, 0.0
    %v1214 = vmax.f32 %v1136, 0.0
    %v1215 = vmax.f32 %v1141, 0.0
    %v1216 = vmax.f32 %v1144, 0.0
    %v1217 = vmax.f32 %v1149, 0.0
    %v1218 = vmax.f32 %v1152, 0.0
    %v1219 = vpack.c.bf16 %v1156, %v1155
    %v1220 = vpack.c.bf16 %v1158, %v1157
    %v1221 = vpack.c.bf16 %v1160, %v1159
    %v1222 = vpack.c.bf16 %v1162, %v1161
    %v1223 = vpack.c.bf16 %v1164, %v1163
    %v1224 = vpack.c.bf16 %v1166, %v1165
    %v1225 = vpack.c.bf16 %v1168, %v1167
    %v1226 = vpack.c.bf16 %v1170, %v1169
    %v1227 = vpack.c.bf16 %v1172, %v1171
    %v1228 = vpack.c.bf16 %v1174, %v1173
    %v1229 = vpack.c.bf16 %v1176, %v1175
    %v1230 = vpack.c.bf16 %v1178, %v1177
    %v1231 = vpack.c.bf16 %v1180, %v1179
    %v1232 = vpack.c.bf16 %v1182, %v1181
    %v1233 = vpack.c.bf16 %v1184, %v1183
    %v1234 = vpack.c.bf16 %v1186, %v1185
    %v1235 = vpack.c.bf16 %v1188, %v1187
    %v1236 = vpack.c.bf16 %v1190, %v1189
    %v1237 = vpack.c.bf16 %v1192, %v1191
    %v1238 = vpack.c.bf16 %v1194, %v1193
    %v1239 = vpack.c.bf16 %v1196, %v1195
    %v1240 = vpack.c.bf16 %v1198, %v1197
    %v1241 = vpack.c.bf16 %v1200, %v1199
    %v1242 = vpack.c.bf16 %v1202, %v1201
    %v1243 = vpack.c.bf16 %v1204, %v1203
    %v1244 = vpack.c.bf16 %v1206, %v1205
    %v1245 = vpack.c.bf16 %v1208, %v1207
    %v1246 = vpack.c.bf16 %v1210, %v1209
    %v1247 = vpack.c.bf16 %v1212, %v1211
    %v1248 = vpack.c.bf16 %v1214, %v1213
    %v1249 = vpack.c.bf16 %v1216, %v1215
    %v1250 = vpack.c.bf16 %v1218, %v1217
    %v1251 = vld [vmem:[#allocation8] sm:$0xf]
    %v1252 = vld [vmem:[#allocation8 + $0x4] sm:$0xf]
    %v1253 = vld [vmem:[#allocation8 + $0x8] sm:$0xf]
    %v1254 = vld [vmem:[#allocation8 + $0xc] sm:$0xf]
    %v1255 = vld [vmem:[#allocation8 + $0x10] sm:$0xf]
    %v1256 = vld [vmem:[#allocation8 + $0x14] sm:$0xf]
    %v1257 = vld [vmem:[#allocation8 + $0x18] sm:$0xf]
    %v1258 = vld [vmem:[#allocation8 + $0x1c] sm:$0xf]
    %v1259 = vld [vmem:[#allocation8 + $0x20] sm:$0xf]
    %v1260 = vld [vmem:[#allocation8 + $0x24] sm:$0xf]
    %v1261 = vld [vmem:[#allocation8 + $0x28] sm:$0xf]
    %v1262 = vld [vmem:[#allocation8 + $0x2c] sm:$0xf]
    %v1263 = vld [vmem:[#allocation8 + $0x30] sm:$0xf]
    %v1264 = vld [vmem:[#allocation8 + $0x34] sm:$0xf]
    %v1265 = vld [vmem:[#allocation8 + $0x38] sm:$0xf]
    %v1266 = vld [vmem:[#allocation8 + $0x3c] sm:$0xf]
    %v1267 = vld [vmem:[%s6] sm:$0x1]
    %v1269 = vlaneseq
    %v1270 = vshrl.u32 %v1269, 7
    %v1271 = vsub.s32 0, %v1270
    %v1272 = vrot.slane %v1267, %v1271
    %v1290 = vunpack.c.l.b16 %v1251
    %v1291 = vunpack.c.l.b16 %v1252
    %v1292 = vunpack.c.l.b16 %v1253
    %v1293 = vunpack.c.l.b16 %v1254
    %v1294 = vunpack.c.l.b16 %v1255
    %v1295 = vunpack.c.l.b16 %v1256
    %v1296 = vunpack.c.l.b16 %v1257
    %v1297 = vunpack.c.l.b16 %v1258
    %v1298 = vunpack.c.l.b16 %v1259
    %v1299 = vunpack.c.l.b16 %v1260
    %v1300 = vunpack.c.l.b16 %v1261
    %v1301 = vunpack.c.l.b16 %v1262
    %v1302 = vunpack.c.l.b16 %v1263
    %v1303 = vunpack.c.l.b16 %v1264
    %v1304 = vunpack.c.l.b16 %v1265
    %v1305 = vunpack.c.l.b16 %v1266
    %v1306 = vpack.c.b16 %v1291, %v1290
    %v1307 = vpack.c.b16 %v1293, %v1292
    %v1308 = vpack.c.b16 %v1295, %v1294
    %v1309 = vpack.c.b16 %v1297, %v1296
    %v1310 = vpack.c.b16 %v1299, %v1298
    %v1311 = vpack.c.b16 %v1301, %v1300
    %v1312 = vpack.c.b16 %v1303, %v1302
    %v1313 = vpack.c.b16 %v1305, %v1304
    %1322 = vmatprep.subr.bf16.mxu0 0
    %1323 = vmatpush1.bf16.msra.mxu0 %v1306
    %1324 = vmatprep.subr.bf16.mxu0 0
    %1325 = vmatpush1.bf16.msra.mxu0 %v1307
    %1326 = vmatprep.subr.bf16.mxu0 0
    %1327 = vmatpush1.bf16.msra.mxu0 %v1308
    %1328 = vmatprep.subr.bf16.mxu0 0
    %1329 = vmatpush1.bf16.msra.mxu0 %v1309
    %1330 = vmatprep.subr.bf16.mxu0 0
    %1331 = vmatpush1.bf16.msra.mxu0 %v1310
    %1332 = vmatprep.subr.bf16.mxu0 0
    %1333 = vmatpush1.bf16.msra.mxu0 %v1311
    %1334 = vmatprep.subr.bf16.mxu0 0
    %1335 = vmatpush1.bf16.msra.mxu0 %v1312
    %1336 = vmatprep.subr.bf16.mxu0 0
    %1337 = vmatpush1.bf16.msra.mxu0 %v1313
    %1338 = vmatprep.subr.bf16.mxu0 0
    %1339 = vmatpush1.bf16.msra.mxu0 0
    %1340 = vmatprep.subr.bf16.mxu0 0
    %1341 = vmatpush1.bf16.msra.mxu0 0
    %1342 = vmatprep.subr.bf16.mxu0 0
    %1343 = vmatpush1.bf16.msra.mxu0 0
    %1344 = vmatprep.subr.bf16.mxu0 0
    %1345 = vmatpush1.bf16.msra.mxu0 0
    %1346 = vmatprep.subr.bf16.mxu0 0
    %1347 = vmatpush1.bf16.msra.mxu0 0
    %1348 = vmatprep.subr.bf16.mxu0 0
    %1349 = vmatpush1.bf16.msra.mxu0 0
    %1350 = vmatprep.subr.bf16.mxu0 0
    %1351 = vmatpush1.bf16.msra.mxu0 0
    %1352 = vmatprep.subr.bf16.mxu0 0
    %1353 = vmatpush1.bf16.msra.mxu0 0
    %1354 = vmatprep.mubr.bf16.mxu0 0
    %1355 = vmatmul.mubr.bf16.gmra.mrb[0].mxu0 %v1219
    %v1356 = vpop.f32.mrb[0].mxu0
    %v1357 = vadd.f32 %v1272, %v1356
    %v1358 = vpop.f32.mrb[0].mxu0
    %v1359 = vpop.f32.mrb[0].mxu0
    %v1360 = vadd.f32 %v1272, %v1359
    %v1361 = vpop.f32.mrb[0].mxu0
    %1362 = vmatprep.mubr.bf16.mxu0 0
    %1363 = vmatmul.mubr.bf16.gmra.mrb[0].mxu0 %v1220
    %v1364 = vpop.f32.mrb[0].mxu0
    %v1365 = vadd.f32 %v1272, %v1364
    %v1366 = vpop.f32.mrb[0].mxu0
    %v1367 = vpop.f32.mrb[0].mxu0
    %v1368 = vadd.f32 %v1272, %v1367
    %v1369 = vpop.f32.mrb[0].mxu0
    %1370 = vmatprep.mubr.bf16.mxu0 0
    %1371 = vmatmul.mubr.bf16.gmra.mrb[0].mxu0 %v1221
    %v1372 = vpop.f32.mrb[0].mxu0
    %v1373 = vadd.f32 %v1272, %v1372
    %v1374 = vpop.f32.mrb[0].mxu0
    %v1375 = vpop.f32.mrb[0].mxu0
    %v1376 = vadd.f32 %v1272, %v1375
    %v1377 = vpop.f32.mrb[0].mxu0
    %1378 = vmatprep.mubr.bf16.mxu0 0
    %1379 = vmatmul.mubr.bf16.gmra.mrb[0].mxu0 %v1222
    %v1380 = vpop.f32.mrb[0].mxu0
    %v1381 = vadd.f32 %v1272, %v1380
    %v1382 = vpop.f32.mrb[0].mxu0
    %v1383 = vpop.f32.mrb[0].mxu0
    %v1384 = vadd.f32 %v1272, %v1383
    %v1385 = vpop.f32.mrb[0].mxu0
    %1386 = vmatprep.mubr.bf16.mxu0 0
    %1387 = vmatmul.mubr.bf16.gmra.mrb[0].mxu0 %v1223
    %v1388 = vpop.f32.mrb[0].mxu0
    %v1389 = vadd.f32 %v1272, %v1388
    %v1390 = vpop.f32.mrb[0].mxu0
    %v1391 = vpop.f32.mrb[0].mxu0
    %v1392 = vadd.f32 %v1272, %v1391
    %v1393 = vpop.f32.mrb[0].mxu0
    %1394 = vmatprep.mubr.bf16.mxu0 0
    %1395 = vmatmul.mubr.bf16.gmra.mrb[0].mxu0 %v1224
    %v1396 = vpop.f32.mrb[0].mxu0
    %v1397 = vadd.f32 %v1272, %v1396
    %v1398 = vpop.f32.mrb[0].mxu0
    %v1399 = vpop.f32.mrb[0].mxu0
    %v1400 = vadd.f32 %v1272, %v1399
    %v1401 = vpop.f32.mrb[0].mxu0
    %1402 = vmatprep.mubr.bf16.mxu0 0
    %1403 = vmatmul.mubr.bf16.gmra.mrb[0].mxu0 %v1225
    %v1404 = vpop.f32.mrb[0].mxu0
    %v1405 = vadd.f32 %v1272, %v1404
    %v1406 = vpop.f32.mrb[0].mxu0
    %v1407 = vpop.f32.mrb[0].mxu0
    %v1408 = vadd.f32 %v1272, %v1407
    %v1409 = vpop.f32.mrb[0].mxu0
    %1410 = vmatprep.mubr.bf16.mxu0 0
    %1411 = vmatmul.mubr.bf16.gmra.mrb[0].mxu0 %v1226
    %v1412 = vpop.f32.mrb[0].mxu0
    %v1413 = vadd.f32 %v1272, %v1412
    %v1414 = vpop.f32.mrb[0].mxu0
    %v1415 = vpop.f32.mrb[0].mxu0
    %v1416 = vadd.f32 %v1272, %v1415
    %v1417 = vpop.f32.mrb[0].mxu0
    %1418 = vmatprep.mubr.bf16.mxu0 0
    %1419 = vmatmul.mubr.bf16.gmra.mrb[0].mxu0 %v1227
    %v1420 = vpop.f32.mrb[0].mxu0
    %v1421 = vadd.f32 %v1272, %v1420
    %v1422 = vpop.f32.mrb[0].mxu0
    %v1423 = vpop.f32.mrb[0].mxu0
    %v1424 = vadd.f32 %v1272, %v1423
    %v1425 = vpop.f32.mrb[0].mxu0
    %1426 = vmatprep.mubr.bf16.mxu0 0
    %1427 = vmatmul.mubr.bf16.gmra.mrb[0].mxu0 %v1228
    %v1428 = vpop.f32.mrb[0].mxu0
    %v1429 = vadd.f32 %v1272, %v1428
    %v1430 = vpop.f32.mrb[0].mxu0
    %v1431 = vpop.f32.mrb[0].mxu0
    %v1432 = vadd.f32 %v1272, %v1431
    %v1433 = vpop.f32.mrb[0].mxu0
    %1434 = vmatprep.mubr.bf16.mxu0 0
    %1435 = vmatmul.mubr.bf16.gmra.mrb[0].mxu0 %v1229
    %v1436 = vpop.f32.mrb[0].mxu0
    %v1437 = vadd.f32 %v1272, %v1436
    %v1438 = vpop.f32.mrb[0].mxu0
    %v1439 = vpop.f32.mrb[0].mxu0
    %v1440 = vadd.f32 %v1272, %v1439
    %v1441 = vpop.f32.mrb[0].mxu0
    %1442 = vmatprep.mubr.bf16.mxu0 0
    %1443 = vmatmul.mubr.bf16.gmra.mrb[0].mxu0 %v1230
    %v1444 = vpop.f32.mrb[0].mxu0
    %v1445 = vadd.f32 %v1272, %v1444
    %v1446 = vpop.f32.mrb[0].mxu0
    %v1447 = vpop.f32.mrb[0].mxu0
    %v1448 = vadd.f32 %v1272, %v1447
    %v1449 = vpop.f32.mrb[0].mxu0
    %1450 = vmatprep.mubr.bf16.mxu0 0
    %1451 = vmatmul.mubr.bf16.gmra.mrb[0].mxu0 %v1231
    %v1452 = vpop.f32.mrb[0].mxu0
    %v1453 = vadd.f32 %v1272, %v1452
    %v1454 = vpop.f32.mrb[0].mxu0
    %v1455 = vpop.f32.mrb[0].mxu0
    %v1456 = vadd.f32 %v1272, %v1455
    %v1457 = vpop.f32.mrb[0].mxu0
    %1458 = vmatprep.mubr.bf16.mxu0 0
    %1459 = vmatmul.mubr.bf16.gmra.mrb[0].mxu0 %v1232
    %v1460 = vpop.f32.mrb[0].mxu0
    %v1461 = vadd.f32 %v1272, %v1460
    %v1462 = vpop.f32.mrb[0].mxu0
    %v1463 = vpop.f32.mrb[0].mxu0
    %v1464 = vadd.f32 %v1272, %v1463
    %v1465 = vpop.f32.mrb[0].mxu0
    %1466 = vmatprep.mubr.bf16.mxu0 0
    %1467 = vmatmul.mubr.bf16.gmra.mrb[0].mxu0 %v1233
    %v1468 = vpop.f32.mrb[0].mxu0
    %v1469 = vadd.f32 %v1272, %v1468
    %v1470 = vpop.f32.mrb[0].mxu0
    %v1471 = vpop.f32.mrb[0].mxu0
    %v1472 = vadd.f32 %v1272, %v1471
    %v1473 = vpop.f32.mrb[0].mxu0
    %1474 = vmatprep.mubr.bf16.mxu0 0
    %1475 = vmatmul.mubr.bf16.gmra.mrb[0].mxu0 %v1234
    %v1476 = vpop.f32.mrb[0].mxu0
    %v1477 = vadd.f32 %v1272, %v1476
    %v1478 = vpop.f32.mrb[0].mxu0
    %v1479 = vpop.f32.mrb[0].mxu0
    %v1480 = vadd.f32 %v1272, %v1479
    %v1481 = vpop.f32.mrb[0].mxu0
    %1482 = vmatprep.mubr.bf16.mxu0 0
    %1483 = vmatmul.mubr.bf16.gmra.mrb[0].mxu0 %v1235
    %v1484 = vpop.f32.mrb[0].mxu0
    %v1485 = vadd.f32 %v1272, %v1484
    %v1486 = vpop.f32.mrb[0].mxu0
    %v1487 = vpop.f32.mrb[0].mxu0
    %v1488 = vadd.f32 %v1272, %v1487
    %v1489 = vpop.f32.mrb[0].mxu0
    %1490 = vmatprep.mubr.bf16.mxu0 0
    %1491 = vmatmul.mubr.bf16.gmra.mrb[0].mxu0 %v1236
    %v1492 = vpop.f32.mrb[0].mxu0
    %v1493 = vadd.f32 %v1272, %v1492
    %v1494 = vpop.f32.mrb[0].mxu0
    %v1495 = vpop.f32.mrb[0].mxu0
    %v1496 = vadd.f32 %v1272, %v1495
    %v1497 = vpop.f32.mrb[0].mxu0
    %1498 = vmatprep.mubr.bf16.mxu0 0
    %1499 = vmatmul.mubr.bf16.gmra.mrb[0].mxu0 %v1237
    %v1500 = vpop.f32.mrb[0].mxu0
    %v1501 = vadd.f32 %v1272, %v1500
    %v1502 = vpop.f32.mrb[0].mxu0
    %v1503 = vpop.f32.mrb[0].mxu0
    %v1504 = vadd.f32 %v1272, %v1503
    %v1505 = vpop.f32.mrb[0].mxu0
    %1506 = vmatprep.mubr.bf16.mxu0 0
    %1507 = vmatmul.mubr.bf16.gmra.mrb[0].mxu0 %v1238
    %v1508 = vpop.f32.mrb[0].mxu0
    %v1509 = vadd.f32 %v1272, %v1508
    %v1510 = vpop.f32.mrb[0].mxu0
    %v1511 = vpop.f32.mrb[0].mxu0
    %v1512 = vadd.f32 %v1272, %v1511
    %v1513 = vpop.f32.mrb[0].mxu0
    %1514 = vmatprep.mubr.bf16.mxu0 0
    %1515 = vmatmul.mubr.bf16.gmra.mrb[0].mxu0 %v1239
    %v1516 = vpop.f32.mrb[0].mxu0
    %v1517 = vadd.f32 %v1272, %v1516
    %v1518 = vpop.f32.mrb[0].mxu0
    %v1519 = vpop.f32.mrb[0].mxu0
    %v1520 = vadd.f32 %v1272, %v1519
    %v1521 = vpop.f32.mrb[0].mxu0
    %1522 = vmatprep.mubr.bf16.mxu0 0
    %1523 = vmatmul.mubr.bf16.gmra.mrb[0].mxu0 %v1240
    %v1524 = vpop.f32.mrb[0].mxu0
    %v1525 = vadd.f32 %v1272, %v1524
    %v1526 = vpop.f32.mrb[0].mxu0
    %v1527 = vpop.f32.mrb[0].mxu0
    %v1528 = vadd.f32 %v1272, %v1527
    %v1529 = vpop.f32.mrb[0].mxu0
    %1530 = vmatprep.mubr.bf16.mxu0 0
    %1531 = vmatmul.mubr.bf16.gmra.mrb[0].mxu0 %v1241
    %v1532 = vpop.f32.mrb[0].mxu0
    %v1533 = vadd.f32 %v1272, %v1532
    %v1534 = vpop.f32.mrb[0].mxu0
    %v1535 = vpop.f32.mrb[0].mxu0
    %v1536 = vadd.f32 %v1272, %v1535
    %v1537 = vpop.f32.mrb[0].mxu0
    %1538 = vmatprep.mubr.bf16.mxu0 0
    %1539 = vmatmul.mubr.bf16.gmra.mrb[0].mxu0 %v1242
    %v1540 = vpop.f32.mrb[0].mxu0
    %v1541 = vadd.f32 %v1272, %v1540
    %v1542 = vpop.f32.mrb[0].mxu0
    %v1543 = vpop.f32.mrb[0].mxu0
    %v1544 = vadd.f32 %v1272, %v1543
    %v1545 = vpop.f32.mrb[0].mxu0
    %1546 = vmatprep.mubr.bf16.mxu0 0
    %1547 = vmatmul.mubr.bf16.gmra.mrb[0].mxu0 %v1243
    %v1548 = vpop.f32.mrb[0].mxu0
    %v1549 = vadd.f32 %v1272, %v1548
    %v1550 = vpop.f32.mrb[0].mxu0
    %v1551 = vpop.f32.mrb[0].mxu0
    %v1552 = vadd.f32 %v1272, %v1551
    %v1553 = vpop.f32.mrb[0].mxu0
    %1554 = vmatprep.mubr.bf16.mxu0 0
    %1555 = vmatmul.mubr.bf16.gmra.mrb[0].mxu0 %v1244
    %v1556 = vpop.f32.mrb[0].mxu0
    %v1557 = vadd.f32 %v1272, %v1556
    %v1558 = vpop.f32.mrb[0].mxu0
    %v1559 = vpop.f32.mrb[0].mxu0
    %v1560 = vadd.f32 %v1272, %v1559
    %v1561 = vpop.f32.mrb[0].mxu0
    %1562 = vmatprep.mubr.bf16.mxu0 0
    %1563 = vmatmul.mubr.bf16.gmra.mrb[0].mxu0 %v1245
    %v1564 = vpop.f32.mrb[0].mxu0
    %v1565 = vadd.f32 %v1272, %v1564
    %v1566 = vpop.f32.mrb[0].mxu0
    %v1567 = vpop.f32.mrb[0].mxu0
    %v1568 = vadd.f32 %v1272, %v1567
    %v1569 = vpop.f32.mrb[0].mxu0
    %1570 = vmatprep.mubr.bf16.mxu0 0
    %1571 = vmatmul.mubr.bf16.gmra.mrb[0].mxu0 %v1246
    %v1572 = vpop.f32.mrb[0].mxu0
    %v1573 = vadd.f32 %v1272, %v1572
    %v1574 = vpop.f32.mrb[0].mxu0
    %v1575 = vpop.f32.mrb[0].mxu0
    %v1576 = vadd.f32 %v1272, %v1575
    %v1577 = vpop.f32.mrb[0].mxu0
    %1578 = vmatprep.mubr.bf16.mxu0 0
    %1579 = vmatmul.mubr.bf16.gmra.mrb[0].mxu0 %v1247
    %v1580 = vpop.f32.mrb[0].mxu0
    %v1581 = vadd.f32 %v1272, %v1580
    %v1582 = vpop.f32.mrb[0].mxu0
    %v1583 = vpop.f32.mrb[0].mxu0
    %v1584 = vadd.f32 %v1272, %v1583
    %v1585 = vpop.f32.mrb[0].mxu0
    %1586 = vmatprep.mubr.bf16.mxu0 0
    %1587 = vmatmul.mubr.bf16.gmra.mrb[0].mxu0 %v1248
    %v1588 = vpop.f32.mrb[0].mxu0
    %v1589 = vadd.f32 %v1272, %v1588
    %v1590 = vpop.f32.mrb[0].mxu0
    %v1591 = vpop.f32.mrb[0].mxu0
    %v1592 = vadd.f32 %v1272, %v1591
    %v1593 = vpop.f32.mrb[0].mxu0
    %1594 = vmatprep.mubr.bf16.mxu0 0
    %1595 = vmatmul.mubr.bf16.gmra.mrb[0].mxu0 %v1249
    %v1596 = vpop.f32.mrb[0].mxu0
    %v1597 = vadd.f32 %v1272, %v1596
    %v1598 = vpop.f32.mrb[0].mxu0
    %v1599 = vpop.f32.mrb[0].mxu0
    %v1600 = vadd.f32 %v1272, %v1599
    %v1601 = vpop.f32.mrb[0].mxu0
    %1602 = vmatprep.mubr.bf16.mxu0 0
    %1603 = vmatmul.mubr.bf16.gmra.mrb[0].mxu0 %v1250
    %v1604 = vpop.f32.mrb[0].mxu0
    %v1605 = vadd.f32 %v1272, %v1604
    %v1606 = vpop.f32.mrb[0].mxu0
    %v1607 = vpop.f32.mrb[0].mxu0
    %v1608 = vadd.f32 %v1272, %v1607
    %v1609 = vpop.f32.mrb[0].mxu0
    %1610 = vdwg.mxu0
    %1611 = vst [vmem:[#allocation10] sm:$0xff] %v1357
    %1612 = vst [vmem:[#allocation10 + $0x8] sm:$0xff] %v1360
    %1613 = vst [vmem:[#allocation10 + $0x10] sm:$0xff] %v1365
    %1614 = vst [vmem:[#allocation10 + $0x18] sm:$0xff] %v1368
    %1615 = vst [vmem:[#allocation10 + $0x20] sm:$0xff] %v1373
    %1616 = vst [vmem:[#allocation10 + $0x28] sm:$0xff] %v1376
    %1617 = vst [vmem:[#allocation10 + $0x30] sm:$0xff] %v1381
    %1618 = vst [vmem:[#allocation10 + $0x38] sm:$0xff] %v1384
    %1619 = vst [vmem:[#allocation10 + $0x40] sm:$0xff] %v1389
    %1620 = vst [vmem:[#allocation10 + $0x48] sm:$0xff] %v1392
    %1621 = vst [vmem:[#allocation10 + $0x50] sm:$0xff] %v1397
    %1622 = vst [vmem:[#allocation10 + $0x58] sm:$0xff] %v1400
    %1623 = vst [vmem:[#allocation10 + $0x60] sm:$0xff] %v1405
    %1624 = vst [vmem:[#allocation10 + $0x68] sm:$0xff] %v1408
    %1625 = vst [vmem:[#allocation10 + $0x70] sm:$0xff] %v1413
    %1626 = vst [vmem:[#allocation10 + $0x78] sm:$0xff] %v1416
    %1627 = vst [vmem:[#allocation10 + $0x80] sm:$0xff] %v1421
    %1628 = vst [vmem:[#allocation10 + $0x88] sm:$0xff] %v1424
    %1629 = vst [vmem:[#allocation10 + $0x90] sm:$0xff] %v1429
    %1630 = vst [vmem:[#allocation10 + $0x98] sm:$0xff] %v1432
    %1631 = vst [vmem:[#allocation10 + $0xa0] sm:$0xff] %v1437
    %1632 = vst [vmem:[#allocation10 + $0xa8] sm:$0xff] %v1440
    %1633 = vst [vmem:[#allocation10 + $0xb0] sm:$0xff] %v1445
    %1634 = vst [vmem:[#allocation10 + $0xb8] sm:$0xff] %v1448
    %1635 = vst [vmem:[#allocation10 + $0xc0] sm:$0xff] %v1453
    %1636 = vst [vmem:[#allocation10 + $0xc8] sm:$0xff] %v1456
    %1637 = vst [vmem:[#allocation10 + $0xd0] sm:$0xff] %v1461
    %1638 = vst [vmem:[#allocation10 + $0xd8] sm:$0xff] %v1464
    %1639 = vst [vmem:[#allocation10 + $0xe0] sm:$0xff] %v1469
    %1640 = vst [vmem:[#allocation10 + $0xe8] sm:$0xff] %v1472
    %1641 = vst [vmem:[#allocation10 + $0xf0] sm:$0xff] %v1477
    %1642 = vst [vmem:[#allocation10 + $0xf8] sm:$0xff] %v1480
    %1643 = vst [vmem:[#allocation10 + $0x100] sm:$0xff] %v1485
    %1644 = vst [vmem:[#allocation10 + $0x108] sm:$0xff] %v1488
    %1645 = vst [vmem:[#allocation10 + $0x110] sm:$0xff] %v1493
    %1646 = vst [vmem:[#allocation10 + $0x118] sm:$0xff] %v1496
    %1647 = vst [vmem:[#allocation10 + $0x120] sm:$0xff] %v1501
    %1648 = vst [vmem:[#allocation10 + $0x128] sm:$0xff] %v1504
    %1649 = vst [vmem:[#allocation10 + $0x130] sm:$0xff] %v1509
    %1650 = vst [vmem:[#allocation10 + $0x138] sm:$0xff] %v1512
    %1651 = vst [vmem:[#allocation10 + $0x140] sm:$0xff] %v1517
    %1652 = vst [vmem:[#allocation10 + $0x148] sm:$0xff] %v1520
    %1653 = vst [vmem:[#allocation10 + $0x150] sm:$0xff] %v1525
    %1654 = vst [vmem:[#allocation10 + $0x158] sm:$0xff] %v1528
    %1655 = vst [vmem:[#allocation10 + $0x160] sm:$0xff] %v1533
    %1656 = vst [vmem:[#allocation10 + $0x168] sm:$0xff] %v1536
    %1657 = vst [vmem:[#allocation10 + $0x170] sm:$0xff] %v1541
    %1658 = vst [vmem:[#allocation10 + $0x178] sm:$0xff] %v1544
    %1659 = vst [vmem:[#allocation10 + $0x180] sm:$0xff] %v1549
    %1660 = vst [vmem:[#allocation10 + $0x188] sm:$0xff] %v1552
    %1661 = vst [vmem:[#allocation10 + $0x190] sm:$0xff] %v1557
    %1662 = vst [vmem:[#allocation10 + $0x198] sm:$0xff] %v1560
    %1663 = vst [vmem:[#allocation10 + $0x1a0] sm:$0xff] %v1565
    %1664 = vst [vmem:[#allocation10 + $0x1a8] sm:$0xff] %v1568
    %1665 = vst [vmem:[#allocation10 + $0x1b0] sm:$0xff] %v1573
    %1666 = vst [vmem:[#allocation10 + $0x1b8] sm:$0xff] %v1576
    %1667 = vst [vmem:[#allocation10 + $0x1c0] sm:$0xff] %v1581
    %1668 = vst [vmem:[#allocation10 + $0x1c8] sm:$0xff] %v1584
    %1669 = vst [vmem:[#allocation10 + $0x1d0] sm:$0xff] %v1589
    %1670 = vst [vmem:[#allocation10 + $0x1d8] sm:$0xff] %v1592
    %1671 = vst [vmem:[#allocation10 + $0x1e0] sm:$0xff] %v1597
    %1672 = vst [vmem:[#allocation10 + $0x1e8] sm:$0xff] %v1600
    %1673 = vst [vmem:[#allocation10 + $0x1f0] sm:$0xff] %v1605
    %1674 = vst [vmem:[#allocation10 + $0x1f8] sm:$0xff] %v1608
    // Predicated region
    $region46: #{tpu_custom_call.1} parent=1 // pred_check
      _
    $region47: #{tpu_custom_call.1} parent=1 // pred_check_branch
      %1676 = sbr.rel (0) target = $region49
    $region48: #{tpu_custom_call.1} parent=1 // pred_region
      %s1678 = ssub.s32 8192, 8192
      %1679 = vsyncadd [#allocation4], %s1678
      %s1680 = sshll.u32 [#allocation10], 4
      %s1681 = int_to_ptr.vmem [resolvable:$true] %s1680
      %1686 = dma.vmem_to_hbm [thread:$0]  %s1681, 8192, %s7, [#allocation4], 128, 128, 8
    $region49: #{tpu_custom_call.1} parent=1 // pred_fallthru
      _
    // Predicated region
    $region50: #{tpu_custom_call.1} parent=1 // pred_check
      _
    $region51: #{tpu_custom_call.1} parent=1 // pred_check_branch
      %1688 = sbr.rel (0) target = $region53
    $region52: #{tpu_custom_call.1} parent=1 // pred_region
      %1689 = dma.done [#allocation4], 8192
    $region53: #{tpu_custom_call.1} parent=1 // pred_fallthru
      _
    %1690 = vsyncpa [#allocation3], 1
    %1691 = vsyncpa [#allocation6], 1
    %1692 = vsyncpa [#allocation9], 1
    %1693 = vsyncpa [#allocation4], 1

</llo_original>
